<compile_context>
chip_gen: v6e
topology: v6e:2x2x1
jax: 0.10.0
libtpu: 0.0.40
codegen_flags: <defaults>
</compile_context>

<pallas_src>
import functools

import jax
import jax.numpy as jnp
from jax.experimental import pallas as pl
from jax.experimental.pallas import tpu as pltpu

FILTERS = 128
LAYERS = 16
IN_CH = 9
BN_EPS = 1e-5
K0 = 128                      # conv0 im2col depth: 9 taps * 9 ch = 81, padded to 128


def _default_per_tap():
    """v5e (128-deep MXU, weakest store path) prefers 9 accumulating dots."""
    try:
        kind = jax.devices()[0].device_kind.lower()
    except Exception:
        return False
    return "v5" in kind


_PER_TAP_DEFAULT = _default_per_tap()


def _pick_batch_tile(batch):
    """Largest batch tile (<=4) that still leaves >=2 grid tiles (v7x: 2 TCs)."""
    for bb in (4, 2, 1):
        if batch % bb == 0 and batch // bb >= 2:
            return bb
    return min(batch, 4)


# ----------------------------- fused kernel ----------------------------------


def _halite_net_kernel(x0_ref, w0_ref, wblk_ref, bias_ref, wp_ref, bp_ref,
                       wv_ref, pol_ref, v_ref, h_ref, *, per_tap):
    """Whole HaliteNet forward for one batch tile of BB elements.

    x0_ref  : (BB, H, W, K0)      bf16  conv0 input, pre-im2col'd in the wrapper
    w0_ref  : (K0, F)             bf16  conv0 weight (BN scale pre-folded)
    wblk_ref: (LAYERS, 9, F, F)   bf16  block weights, VMEM-resident
    bias_ref: (LAYERS+1, 1, F)    f32   folded conv-bias + BN shift per layer
    wp_ref  : (F, 8)  / bp_ref: (1, 8)  fused policy heads [ships(6)|yards(2)]
    wv_ref  : (1, 2F)                  value head (Linear, no bias)
    h_ref   : (BB, H, W, F)       f32   persistent VMEM activation scratch
    """
    BB, H, W, F = h_ref.shape
    HW = H * W
    M = BB * HW

    # ---------------- layer 0: conv0 (K=128 im2col matmul) -------------------
    x0 = x0_ref[...].reshape(M, x0_ref.shape[-1])                   # bf16
    acc0 = jnp.dot(x0, w0_ref[...], preferred_element_type=jnp.float32)
    h0 = jnp.maximum(acc0 + bias_ref[0], 0.0)                       # bias + relu
    h_ref[...] = h0.reshape(BB, H, W, F)

    # -------- residual torus-conv blocks (weights resident, in-kernel loop) --
    @pl.loop(0, LAYERS)
    def _(l):
        xf = h_ref[...]                                             # (BB,H,W,F) f32
        xb = xf.astype(jnp.bfloat16)                                # cast ONCE per layer
        # circular (torus) pad in bf16: W axis then H axis
        xw = jnp.concatenate([xb[:, :, W - 1:], xb, xb[:, :, :1]], axis=2)
        xp = jnp.concatenate([xw[:, H - 1:], xw, xw[:, :1]], axis=1)  # (BB,H+2,W+2,F)

        w_l = wblk_ref[l]                                           # (9, F, F) bf16

        if per_tap:
            # v5e: nine accumulating K=128 dots, no im2col staging buffer.
            acc = jnp.zeros((M, F), jnp.float32)
            for t in range(9):
                a, b = t // 3, t % 3
                tap = xp[:, a:a + H, b:b + W, :].reshape(M, F)
                acc = acc + jnp.dot(tap, w_l[t],
                                    preferred_element_type=jnp.float32)
        else:
            # v6e/v7x: one fused K=9F im2col matmul on the MXU.
            cols = jnp.concatenate(
                [xp[:, a:a + H, b:b + W, :] for a in range(3) for b in range(3)],
                axis=-1)                                            # (BB,H,W,9F) bf16
            acc = jnp.dot(cols.reshape(M, 9 * F), w_l.reshape(9 * F, F),
                          preferred_element_type=jnp.float32)       # (M,F) f32

        out = acc + bias_ref[l + 1]                                 # folded BN bias
        h_new = jnp.maximum(out + xf.reshape(M, F), 0.0)            # residual + relu
        h_ref[...] = h_new.reshape(BB, H, W, F)

    # ---------------------------- heads --------------------------------------
    h = h_ref[...]                                                  # (BB,H,W,F) f32
    h2 = h.reshape(BB, HW, F)
    hsum = jnp.sum(h2, axis=1)                                      # (BB,F) == h_head
    feat = jnp.concatenate([hsum, hsum * (1.0 / HW)], axis=-1)      # (BB,2F) [sum|mean]
    v = jnp.tanh(jnp.sum(feat * wv_ref[...], axis=-1, keepdims=True))
    v_ref[...] = v.reshape(BB, 1, 1)

    # ships(6) + shipyards(2) 1x1 convs fused into one (F,8) matmul
    pol = jnp.dot(h.reshape(M, F), wp_ref[...],
                  preferred_element_type=jnp.float32) + bp_ref[...]
    pol_ref[...] = pol.reshape(BB, HW, 8)


# ----------------------------- wrapper ----------------------------------------


@functools.partial(jax.jit, static_argnums=(2,))
def _forward_jit(x_nchw, params, per_tap):
    x = jnp.transpose(x_nchw, (0, 2, 3, 1)).astype(jnp.float32)     # NCHW -> NHWC
    B, H, W, cin = x.shape
    F = FILTERS
    BB = _pick_batch_tile(B)

    # conv0 im2col over the torus (one-time layout prep on the 9-ch input):
    # column (a*3+b)*cin + c  <->  x[(i+a-1)%H, (j+b-1)%W, c]; pad K 81 -> 128;
    # pre-cast to bf16 (it is only ever an MXU operand).
    taps = [jnp.roll(x, (1 - a, 1 - b), axis=(1, 2))
            for a in range(3) for b in range(3)]
    x0 = jnp.concatenate(taps, axis=-1)
    x0 = jnp.pad(x0, ((0, 0), (0, 0), (0, 0), (0, K0 - 9 * cin)))
    x0 = x0.astype(jnp.bfloat16)

    w0, wblk, biases, wp, bp, wv = (
        params[k] for k in ('w0', 'wblk', 'biases', 'wp', 'bp', 'wv'))

    kernel = functools.partial(_halite_net_kernel, per_tap=per_tap)
    pol, v = pl.pallas_call(
        kernel,
        out_shape=(
            jax.ShapeDtypeStruct((B, H * W, 8), jnp.float32),       # [ships(6)|yards(2)]
            jax.ShapeDtypeStruct((B, 1, 1), jnp.float32),           # value
        ),
        grid=(B // BB,),
        in_specs=[
            pl.BlockSpec((BB, H, W, K0), lambda b: (b, 0, 0, 0)),         # conv0 input
            pl.BlockSpec((K0, F), lambda b: (0, 0)),                      # conv0 weight (resident)
            pl.BlockSpec((LAYERS, 9, F, F), lambda b: (0, 0, 0, 0)),      # block weights (resident)
            pl.BlockSpec((LAYERS + 1, 1, F), lambda b: (0, 0, 0)),        # folded biases (resident)
            pl.BlockSpec((F, 8), lambda b: (0, 0)),                       # fused policy weight
            pl.BlockSpec((1, 8), lambda b: (0, 0)),                       # fused policy bias
            pl.BlockSpec((1, 2 * F), lambda b: (0, 0)),                   # value-head weight row
        ],
        out_specs=(
            pl.BlockSpec((BB, H * W, 8), lambda b: (b, 0, 0)),
            pl.BlockSpec((BB, 1, 1), lambda b: (b, 0, 0)),
        ),
        scratch_shapes=[pltpu.VMEM((BB, H, W, F), jnp.float32)],          # persistent activation
        compiler_params=pltpu.CompilerParams(
            dimension_semantics=("parallel",),
            vmem_limit_bytes=48 * 1024 * 1024),                           # <= v7x 64 MiB/TC
    )(x0, w0, wblk, biases, wp, bp, wv)

    # PyTorch: (B,C,H,W).transpose(-3,-2).transpose(-2,-1).flatten(1) == NHWC flat
    p_ships = pol[..., :6].reshape(B, H * W * 6)
    p_shipyards = pol[..., 6:].reshape(B, H * W * 2)
    return {'policy_ships': p_ships, 'policy_shipyards': p_shipyards,
            'value': v.reshape(B, 1)}


def halite_net_forward(x_nchw, params, *, per_tap=None):
    """Forward pass matching HaliteNet.forward (BatchNorm in inference mode)."""
    if per_tap is None:
        per_tap = _PER_TAP_DEFAULT
    return _forward_jit(x_nchw, params, bool(per_tap))


# ----------------------------- parameter init ---------------------------------


def init_params(key):
    keys = iter(jax.random.split(key, 6 * (LAYERS + 1) + 5))

    def torus_layer(cin, cout):
        # PyTorch shapes: conv.weight (cout,cin,3,3), conv.bias (cout,),
        #                 bn.{gamma,beta,running_mean,running_var} (cout,)
        w = jax.random.normal(next(keys), (cout, cin, 3, 3), jnp.float32) * 0.05
        cb = jax.random.normal(next(keys), (cout,), jnp.float32) * 0.05
        gamma = 1.0 + 0.1 * jax.random.normal(next(keys), (cout,), jnp.float32)
        beta = 0.1 * jax.random.normal(next(keys), (cout,), jnp.float32)
        mean = 0.1 * jax.random.normal(next(keys), (cout,), jnp.float32)
        var = jax.random.uniform(next(keys), (cout,), jnp.float32, 0.5, 1.5)
        scale = gamma / jnp.sqrt(var + BN_EPS)                      # folded BN
        bias = beta + (cb - mean) * scale
        wk = jnp.transpose(w, (2, 3, 1, 0)).reshape(9, cin, cout)   # (tap, cin, cout)
        wk = wk * scale                                             # fold scale into weight
        return wk, bias

    wk0, b0 = torus_layer(IN_CH, FILTERS)
    blocks = [torus_layer(FILTERS, FILTERS) for _ in range(LAYERS)]

    # conv0 as im2col matmul weight: (81, F) zero-padded to (K0, F), bf16 operand.
    w0 = jnp.pad(wk0.reshape(9 * IN_CH, FILTERS),
                 ((0, K0 - 9 * IN_CH), (0, 0))).astype(jnp.bfloat16)

    # Block weights stacked as (LAYERS, 9, F, F) bf16 (no placeholder entry).
    wblk = jnp.stack([wk for wk, _ in blocks]).astype(jnp.bfloat16)
    # Folded biases: entry 0 = conv0, entries 1..LAYERS = blocks.
    biases = jnp.stack([b0] + [bb for _, bb in blocks]).reshape(LAYERS + 1, 1, FILTERS)

    # Policy heads (1x1 convs) fused: columns [ships(6) | shipyards(2)].
    ws = jax.random.normal(next(keys), (6, FILTERS), jnp.float32) * 0.05
    bs = jax.random.normal(next(keys), (6,), jnp.float32) * 0.05
    wy = jax.random.normal(next(keys), (2, FILTERS), jnp.float32) * 0.05
    by = jax.random.normal(next(keys), (2,), jnp.float32) * 0.05
    wp = jnp.concatenate([ws.T, wy.T], axis=1)                      # (F, 8)
    bp = jnp.concatenate([bs, by]).reshape(1, 8)
    # Value head: Linear(2F, 1, bias=False), stored as a (1, 2F) row vector.
    wv = jax.random.normal(next(keys), (1, 2 * FILTERS), jnp.float32) * 0.05

    return {'w0': w0, 'wblk': wblk, 'biases': biases,
            'wp': wp, 'bp': bp, 'wv': wv}


# ----------------------------- main --------------------------------------------

if __name__ == "__main__":
    key = jax.random.PRNGKey(0)
    pkey, xkey = jax.random.split(key)
    params = init_params(pkey)

    B, H, W = 2, 16, 16
    x = jax.random.normal(xkey, (B, IN_CH, H, W), jnp.float32)      # NCHW like PyTorch

    out = jax.block_until_ready(halite_net_forward(x, params))

    assert out['policy_ships'].shape == (B, H * W * 6)
    assert out['policy_shipyards'].shape == (B, H * W * 2)
    assert out['value'].shape == (B, 1)
    assert all(bool(jnp.all(jnp.isfinite(v))) for v in out.values())
    print("KERNEL_OK")
</pallas_src>

<mosaic_0001>
module attributes {stable_mosaic.version = 11 : i64} {
  func.func @_halite_net_kernel(%arg0: i32, %arg1: memref<1x16x16x128xbf16, #tpu.memory_space<vmem>>, %arg2: memref<128x128xbf16, #tpu.memory_space<vmem>>, %arg3: memref<16x9x128x128xbf16, #tpu.memory_space<vmem>>, %arg4: memref<17x1x128xf32, #tpu.memory_space<vmem>>, %arg5: memref<128x8xf32, #tpu.memory_space<vmem>>, %arg6: memref<1x8xf32, #tpu.memory_space<vmem>>, %arg7: memref<1x256xf32, #tpu.memory_space<vmem>>, %arg8: memref<1x256x8xf32, #tpu.memory_space<vmem>>, %arg9: memref<1x1x1xf32, #tpu.memory_space<vmem>>, %arg10: memref<1x16x16x128xf32, #tpu.memory_space<vmem>>) attributes {dimension_semantics = [#tpu.dimension_semantics<parallel>], iteration_bounds = array<i64: 2>, scalar_prefetch = 0 : i64, scratch_operands = 1 : i64, tpu.core_type = #tpu.core_type<tc>, window_params = [{transform_indices = @transform_0, window_bounds = array<i64: 1, 16, 16, 128>}, {pipeline_mode = #tpu.pipeline_mode<synchronous>, transform_indices = @transform_1, window_bounds = array<i64: 128, 128>}, {pipeline_mode = #tpu.pipeline_mode<synchronous>, transform_indices = @transform_2, window_bounds = array<i64: 16, 9, 128, 128>}, {pipeline_mode = #tpu.pipeline_mode<synchronous>, transform_indices = @transform_3, window_bounds = array<i64: 17, 1, 128>}, {pipeline_mode = #tpu.pipeline_mode<synchronous>, transform_indices = @transform_4, window_bounds = array<i64: 128, 8>}, {pipeline_mode = #tpu.pipeline_mode<synchronous>, transform_indices = @transform_5, window_bounds = array<i64: 1, 8>}, {pipeline_mode = #tpu.pipeline_mode<synchronous>, transform_indices = @transform_6, window_bounds = array<i64: 1, 256>}, {transform_indices = @transform_7, window_bounds = array<i64: 1, 256, 8>}, {transform_indices = @transform_8, window_bounds = array<i64: 1, 1, 1>}]} {
    %c0 = arith.constant 0 : index
    %c0_0 = arith.constant 0 : index
    %c0_1 = arith.constant 0 : index
    %c0_2 = arith.constant 0 : index
    %0 = vector.load %arg1[%c0, %c0_0, %c0_1, %c0_2] : memref<1x16x16x128xbf16, #tpu.memory_space<vmem>>, vector<1x16x16x128xbf16>
    %1 = vector.shape_cast %0 : vector<1x16x16x128xbf16> to vector<256x128xbf16>
    %c0_3 = arith.constant 0 : index
    %c0_4 = arith.constant 0 : index
    %2 = vector.load %arg2[%c0_3, %c0_4] : memref<128x128xbf16, #tpu.memory_space<vmem>>, vector<128x128xbf16>
    %cst = arith.constant dense<0.000000e+00> : vector<256x128xf32>
    %3 = tpu.matmul %1, %2, %cst {dimension_numbers = #tpu.dot_dimension_numbers<[1], [0], [0], [1], [0, 0, 1, 1], [], []>} : vector<256x128xbf16>, vector<128x128xbf16>, vector<256x128xf32> -> vector<256x128xf32>
    %c0_5 = arith.constant 0 : index
    %c0_6 = arith.constant 0 : index
    %c0_7 = arith.constant 0 : index
    %4 = vector.load %arg4[%c0_5, %c0_6, %c0_7] : memref<17x1x128xf32, #tpu.memory_space<vmem>>, vector<1x1x128xf32>
    %5 = vector.shape_cast %4 : vector<1x1x128xf32> to vector<1x128xf32>
    %6 = vector.broadcast %5 : vector<1x128xf32> to vector<256x128xf32>
    %7 = arith.addf %3, %6 : vector<256x128xf32>
    %cst_8 = arith.constant 0.000000e+00 : f32
    %8 = vector.broadcast %cst_8 : f32 to vector<256x128xf32>
    %9 = arith.maximumf %7, %8 : vector<256x128xf32>
    %10 = vector.shape_cast %9 : vector<256x128xf32> to vector<1x16x16x128xf32>
    %c0_9 = arith.constant 0 : index
    %c0_10 = arith.constant 0 : index
    %c0_11 = arith.constant 0 : index
    %c0_12 = arith.constant 0 : index
    %11 = vector.load %arg10[%c0_9, %c0_10, %c0_11, %c0_12] : memref<1x16x16x128xf32, #tpu.memory_space<vmem>>, vector<1x16x16x128xf32>
    tpu.vector_store %arg10[%c0_9, %c0_10, %c0_11, %c0_12], %10 {strides = array<i32>} : memref<1x16x16x128xf32, #tpu.memory_space<vmem>>, vector<1x16x16x128xf32>,
    %c0_i32 = arith.constant 0 : i32
    %c16_i32 = arith.constant 16 : i32
    %12 = arith.addi %c0_i32, %c16_i32 : i32
    %c1_i32 = arith.constant 1 : i32
    scf.for %arg11 = %c0_i32 to %12 step %c1_i32  : i32 {
      %c1_i32_34 = arith.constant 1 : i32
      %34 = arith.muli %arg11, %c1_i32_34 : i32
      %c0_i32_35 = arith.constant 0 : i32
      %35 = arith.addi %c0_i32_35, %34 : i32
      %c0_36 = arith.constant 0 : index
      %c0_37 = arith.constant 0 : index
      %c0_38 = arith.constant 0 : index
      %c0_39 = arith.constant 0 : index
      %36 = vector.load %arg10[%c0_36, %c0_37, %c0_38, %c0_39] : memref<1x16x16x128xf32, #tpu.memory_space<vmem>>, vector<1x16x16x128xf32>
      %37 = arith.truncf %36 : vector<1x16x16x128xf32> to vector<1x16x16x128xbf16>
      %38 = vector.extract_strided_slice %37 {offsets = [0, 0, 15, 0], sizes = [1, 16, 1, 128], strides = [1, 1, 1, 1]} : vector<1x16x16x128xbf16> to vector<1x16x1x128xbf16>
      %39 = vector.extract_strided_slice %37 {offsets = [0, 0, 0, 0], sizes = [1, 16, 1, 128], strides = [1, 1, 1, 1]} : vector<1x16x16x128xbf16> to vector<1x16x1x128xbf16>
      %40 = tpu.concatenate %38, %37, %39 in 2 : vector<1x16x1x128xbf16>, vector<1x16x16x128xbf16>, vector<1x16x1x128xbf16> -> vector<1x16x18x128xbf16>
      %41 = vector.extract_strided_slice %40 {offsets = [0, 15, 0, 0], sizes = [1, 1, 18, 128], strides = [1, 1, 1, 1]} : vector<1x16x18x128xbf16> to vector<1x1x18x128xbf16>
      %42 = vector.extract_strided_slice %40 {offsets = [0, 0, 0, 0], sizes = [1, 1, 18, 128], strides = [1, 1, 1, 1]} : vector<1x16x18x128xbf16> to vector<1x1x18x128xbf16>
      %43 = tpu.concatenate %41, %40, %42 in 1 : vector<1x1x18x128xbf16>, vector<1x16x18x128xbf16>, vector<1x1x18x128xbf16> -> vector<1x18x18x128xbf16>
      %44 = arith.index_cast %35 : i32 to index
      %c0_40 = arith.constant 0 : index
      %c0_41 = arith.constant 0 : index
      %c0_42 = arith.constant 0 : index
      %45 = vector.load %arg3[%44, %c0_40, %c0_41, %c0_42] : memref<16x9x128x128xbf16, #tpu.memory_space<vmem>>, vector<1x9x128x128xbf16>
      %46 = vector.shape_cast %45 : vector<1x9x128x128xbf16> to vector<9x128x128xbf16>
      %47 = vector.extract_strided_slice %43 {offsets = [0, 0, 0, 0], sizes = [1, 16, 16, 128], strides = [1, 1, 1, 1]} : vector<1x18x18x128xbf16> to vector<1x16x16x128xbf16>
      %48 = vector.extract_strided_slice %43 {offsets = [0, 0, 1, 0], sizes = [1, 16, 16, 128], strides = [1, 1, 1, 1]} : vector<1x18x18x128xbf16> to vector<1x16x16x128xbf16>
      %49 = vector.extract_strided_slice %43 {offsets = [0, 0, 2, 0], sizes = [1, 16, 16, 128], strides = [1, 1, 1, 1]} : vector<1x18x18x128xbf16> to vector<1x16x16x128xbf16>
      %50 = vector.extract_strided_slice %43 {offsets = [0, 1, 0, 0], sizes = [1, 16, 16, 128], strides = [1, 1, 1, 1]} : vector<1x18x18x128xbf16> to vector<1x16x16x128xbf16>
      %51 = vector.extract_strided_slice %43 {offsets = [0, 1, 1, 0], sizes = [1, 16, 16, 128], strides = [1, 1, 1, 1]} : vector<1x18x18x128xbf16> to vector<1x16x16x128xbf16>
      %52 = vector.extract_strided_slice %43 {offsets = [0, 1, 2, 0], sizes = [1, 16, 16, 128], strides = [1, 1, 1, 1]} : vector<1x18x18x128xbf16> to vector<1x16x16x128xbf16>
      %53 = vector.extract_strided_slice %43 {offsets = [0, 2, 0, 0], sizes = [1, 16, 16, 128], strides = [1, 1, 1, 1]} : vector<1x18x18x128xbf16> to vector<1x16x16x128xbf16>
      %54 = vector.extract_strided_slice %43 {offsets = [0, 2, 1, 0], sizes = [1, 16, 16, 128], strides = [1, 1, 1, 1]} : vector<1x18x18x128xbf16> to vector<1x16x16x128xbf16>
      %55 = vector.extract_strided_slice %43 {offsets = [0, 2, 2, 0], sizes = [1, 16, 16, 128], strides = [1, 1, 1, 1]} : vector<1x18x18x128xbf16> to vector<1x16x16x128xbf16>
      %56 = tpu.concatenate %47, %48, %49, %50, %51, %52, %53, %54, %55 in 3 : vector<1x16x16x128xbf16>, vector<1x16x16x128xbf16>, vector<1x16x16x128xbf16>, vector<1x16x16x128xbf16>, vector<1x16x16x128xbf16>, vector<1x16x16x128xbf16>, vector<1x16x16x128xbf16>, vector<1x16x16x128xbf16>, vector<1x16x16x128xbf16> -> vector<1x16x16x1152xbf16>
      %57 = vector.shape_cast %56 : vector<1x16x16x1152xbf16> to vector<256x1152xbf16>
      %58 = vector.shape_cast %46 : vector<9x128x128xbf16> to vector<1152x128xbf16>
      %cst_43 = arith.constant dense<0.000000e+00> : vector<256x128xf32>
      %59 = tpu.matmul %57, %58, %cst_43 {dimension_numbers = #tpu.dot_dimension_numbers<[1], [0], [0], [1], [0, 0, 1, 1], [], []>} : vector<256x1152xbf16>, vector<1152x128xbf16>, vector<256x128xf32> -> vector<256x128xf32>
      %c1_i32_44 = arith.constant 1 : i32
      %60 = arith.addi %35, %c1_i32_44 : i32
      %61 = arith.index_cast %60 : i32 to index
      %c0_45 = arith.constant 0 : index
      %c0_46 = arith.constant 0 : index
      %62 = vector.load %arg4[%61, %c0_45, %c0_46] : memref<17x1x128xf32, #tpu.memory_space<vmem>>, vector<1x1x128xf32>
      %63 = vector.shape_cast %62 : vector<1x1x128xf32> to vector<1x128xf32>
      %64 = vector.broadcast %63 : vector<1x128xf32> to vector<256x128xf32>
      %65 = arith.addf %59, %64 : vector<256x128xf32>
      %66 = vector.shape_cast %36 : vector<1x16x16x128xf32> to vector<256x128xf32>
      %67 = arith.addf %65, %66 : vector<256x128xf32>
      %cst_47 = arith.constant 0.000000e+00 : f32
      %68 = vector.broadcast %cst_47 : f32 to vector<256x128xf32>
      %69 = arith.maximumf %67, %68 : vector<256x128xf32>
      %70 = vector.shape_cast %69 : vector<256x128xf32> to vector<1x16x16x128xf32>
      %c0_48 = arith.constant 0 : index
      %c0_49 = arith.constant 0 : index
      %c0_50 = arith.constant 0 : index
      %c0_51 = arith.constant 0 : index
      %71 = vector.load %arg10[%c0_48, %c0_49, %c0_50, %c0_51] : memref<1x16x16x128xf32, #tpu.memory_space<vmem>>, vector<1x16x16x128xf32>
      tpu.vector_store %arg10[%c0_48, %c0_49, %c0_50, %c0_51], %70 {strides = array<i32>} : memref<1x16x16x128xf32, #tpu.memory_space<vmem>>, vector<1x16x16x128xf32>,
    }
    %c16_i32_13 = arith.constant 16 : i32
    %c0_14 = arith.constant 0 : index
    %c0_15 = arith.constant 0 : index
    %c0_16 = arith.constant 0 : index
    %c0_17 = arith.constant 0 : index
    %13 = vector.load %arg10[%c0_14, %c0_15, %c0_16, %c0_17] : memref<1x16x16x128xf32, #tpu.memory_space<vmem>>, vector<1x16x16x128xf32>
    %14 = vector.shape_cast %13 : vector<1x16x16x128xf32> to vector<1x256x128xf32>
    %cst_18 = arith.constant dense<0.000000e+00> : vector<1x128xf32>
    %15 = vector.multi_reduction <add>, %14, %cst_18 [1] : vector<1x256x128xf32> to vector<1x128xf32>
    %cst_19 = arith.constant 3.906250e-03 : f32
    %16 = vector.broadcast %cst_19 : f32 to vector<1x128xf32>
    %17 = arith.mulf %15, %16 : vector<1x128xf32>
    %18 = tpu.concatenate %15, %17 in 1 : vector<1x128xf32>, vector<1x128xf32> -> vector<1x256xf32>
    %c0_20 = arith.constant 0 : index
    %c0_21 = arith.constant 0 : index
    %19 = vector.load %arg7[%c0_20, %c0_21] : memref<1x256xf32, #tpu.memory_space<vmem>>, vector<1x256xf32>
    %20 = arith.mulf %18, %19 : vector<1x256xf32>
    %cst_22 = arith.constant dense<0.000000e+00> : vector<1xf32>
    %21 = vector.multi_reduction <add>, %20, %cst_22 [1] : vector<1x256xf32> to vector<1xf32>
    %22 = vector.shape_cast %21 : vector<1xf32> to vector<1x1xf32>
    %23 = math.tanh %22 : vector<1x1xf32>
    %24 = vector.shape_cast %23 : vector<1x1xf32> to vector<1x1x1xf32>
    %c0_23 = arith.constant 0 : index
    %c0_24 = arith.constant 0 : index
    %c0_25 = arith.constant 0 : index
    %25 = vector.load %arg9[%c0_23, %c0_24, %c0_25] : memref<1x1x1xf32, #tpu.memory_space<vmem>>, vector<1x1x1xf32>
    tpu.vector_store %arg9[%c0_23, %c0_24, %c0_25], %24 {strides = array<i32>} : memref<1x1x1xf32, #tpu.memory_space<vmem>>, vector<1x1x1xf32>,
    %26 = vector.shape_cast %13 : vector<1x16x16x128xf32> to vector<256x128xf32>
    %c0_26 = arith.constant 0 : index
    %c0_27 = arith.constant 0 : index
    %27 = vector.load %arg5[%c0_26, %c0_27] : memref<128x8xf32, #tpu.memory_space<vmem>>, vector<128x8xf32>
    %cst_28 = arith.constant dense<0.000000e+00> : vector<256x8xf32>
    %28 = tpu.matmul %26, %27, %cst_28 {dimension_numbers = #tpu.dot_dimension_numbers<[1], [0], [0], [1], [0, 0, 1, 1], [], []>} : vector<256x128xf32>, vector<128x8xf32>, vector<256x8xf32> -> vector<256x8xf32>
    %c0_29 = arith.constant 0 : index
    %c0_30 = arith.constant 0 : index
    %29 = vector.load %arg6[%c0_29, %c0_30] : memref<1x8xf32, #tpu.memory_space<vmem>>, vector<1x8xf32>
    %30 = vector.broadcast %29 : vector<1x8xf32> to vector<256x8xf32>
    %31 = arith.addf %28, %30 : vector<256x8xf32>
    %32 = vector.shape_cast %31 : vector<256x8xf32> to vector<1x256x8xf32>
    %c0_31 = arith.constant 0 : index
    %c0_32 = arith.constant 0 : index
    %c0_33 = arith.constant 0 : index
    %33 = vector.load %arg8[%c0_31, %c0_32, %c0_33] : memref<1x256x8xf32, #tpu.memory_space<vmem>>, vector<1x256x8xf32>
    tpu.vector_store %arg8[%c0_31, %c0_32, %c0_33], %32 {strides = array<i32>} : memref<1x256x8xf32, #tpu.memory_space<vmem>>, vector<1x256x8xf32>,
    return
  }
  func.func @transform_0(%arg0: i32) -> (i32, i32, i32, i32) {
    %c0_i32 = arith.constant 0 : i32
    %c0_i32_0 = arith.constant 0 : i32
    %c0_i32_1 = arith.constant 0 : i32
    %c0_i32_2 = arith.constant 0 : i32
    return %arg0, %c0_i32, %c0_i32_0, %c0_i32_1 : i32, i32, i32, i32
  }
  func.func @transform_1(%arg0: i32) -> (i32, i32) {
    %c0_i32 = arith.constant 0 : i32
    %c0_i32_0 = arith.constant 0 : i32
    %c0_i32_1 = arith.constant 0 : i32
    return %c0_i32, %c0_i32_0 : i32, i32
  }
  func.func @transform_2(%arg0: i32) -> (i32, i32, i32, i32) {
    %c0_i32 = arith.constant 0 : i32
    %c0_i32_0 = arith.constant 0 : i32
    %c0_i32_1 = arith.constant 0 : i32
    %c0_i32_2 = arith.constant 0 : i32
    %c0_i32_3 = arith.constant 0 : i32
    return %c0_i32, %c0_i32_0, %c0_i32_1, %c0_i32_2 : i32, i32, i32, i32
  }
  func.func @transform_3(%arg0: i32) -> (i32, i32, i32) {
    %c0_i32 = arith.constant 0 : i32
    %c0_i32_0 = arith.constant 0 : i32
    %c0_i32_1 = arith.constant 0 : i32
    %c0_i32_2 = arith.constant 0 : i32
    return %c0_i32, %c0_i32_0, %c0_i32_1 : i32, i32, i32
  }
  func.func @transform_4(%arg0: i32) -> (i32, i32) {
    %c0_i32 = arith.constant 0 : i32
    %c0_i32_0 = arith.constant 0 : i32
    %c0_i32_1 = arith.constant 0 : i32
    return %c0_i32, %c0_i32_0 : i32, i32
  }
  func.func @transform_5(%arg0: i32) -> (i32, i32) {
    %c0_i32 = arith.constant 0 : i32
    %c0_i32_0 = arith.constant 0 : i32
    %c0_i32_1 = arith.constant 0 : i32
    return %c0_i32, %c0_i32_0 : i32, i32
  }
  func.func @transform_6(%arg0: i32) -> (i32, i32) {
    %c0_i32 = arith.constant 0 : i32
    %c0_i32_0 = arith.constant 0 : i32
    %c0_i32_1 = arith.constant 0 : i32
    return %c0_i32, %c0_i32_0 : i32, i32
  }
  func.func @transform_7(%arg0: i32) -> (i32, i32, i32) {
    %c0_i32 = arith.constant 0 : i32
    %c0_i32_0 = arith.constant 0 : i32
    %c0_i32_1 = arith.constant 0 : i32
    return %arg0, %c0_i32, %c0_i32_0 : i32, i32, i32
  }
  func.func @transform_8(%arg0: i32) -> (i32, i32, i32) {
    %c0_i32 = arith.constant 0 : i32
    %c0_i32_0 = arith.constant 0 : i32
    %c0_i32_1 = arith.constant 0 : i32
    return %arg0, %c0_i32, %c0_i32_0 : i32, i32, i32
  }
}

</mosaic_0001>

<llo_original>
// kernel: _forward_jit.1
$region0: #{_forward_jit.1}
  #allocation0 [shape = 'u32[]', space=smem, size = 0x4, offset = 0x4, fixed_abs, tag = 'smem constant byte address 0x4 - core index']
  #allocation1 [shape = 'u32[144,128]{1,0:T(1,128)}', space=vmem, size = 0x12000, scoped, tag = 'internal scratch']
  #allocation2 [shape = 'f32[1,16,16,128]{3,2,1,0:T(8,128)}', space=vmem, size = 0x20000, scoped, tag = 'scratch operand']
  %s0 = inlined_call_operand.vmem [shape: bf16[2,16,16,128], index: 0, kind: input, shape index: {}]
  %s1 = inlined_call_operand.vmem [shape: bf16[128,128], index: 1, kind: input, shape index: {}]
  %s2 = inlined_call_operand.vmem [shape: bf16[16,9,128,128], index: 2, kind: input, shape index: {}]
  %s3 = inlined_call_operand.vmem [shape: f32[17,1,128], index: 3, kind: input, shape index: {}]
  %s4 = inlined_call_operand.vmem [shape: f32[128,8], index: 4, kind: input, shape index: {}]
  %s5 = inlined_call_operand.vmem [shape: f32[1,8], index: 5, kind: input, shape index: {}]
  %s6 = inlined_call_operand.vmem [shape: f32[1,256], index: 6, kind: input, shape index: {}]
  %s7 = inlined_call_operand.vmem [shape: f32[2,256,8], index: 7, kind: output, shape index: {0}]
  %s8 = inlined_call_operand.vmem [shape: f32[2,1,1], index: 8, kind: output, shape index: {1}]
  %9 = xla_tuple %s7, %s8
  %s10 = sld [smem:[#allocation0]]
  $region76: #{_forward_jit.1} parent=0
    _
  %s12 = ssub.s32 1, %s10
  %s13 = scalar_select 0, %s12, %s10
  loop: start=0, step=1, limit=4
  $region2: #{_forward_jit.1} parent=0 // loop_pre_header
    _
  $region3: #{_forward_jit.1} parent=0 // loop_header
    %s15 = sphi 0, %s19
    %p16 = scmp.ge.s32.totalorder %s15, 4
    %s25 = sphi 0, %s27
    %s28 = sphi 0, %s25
    %s29 = sphi 0, %s28
    %s45 = sphi 0, %s29
    %s49 = sphi 0, %s49
    %s51 = sphi 0, %s49
    %s52 = sphi 0, %s51
    %s66 = sphi 0, %s52
    %s70 = sphi 0, %s70
    %s72 = sphi 0, %s70
    %s73 = sphi 0, %s72
    %s87 = sphi 0, %s73
    %s91 = sphi 0, %s91
    %s93 = sphi 0, %s91
    %s94 = sphi 0, %s93
    %s108 = sphi 0, %s94
    %s112 = sphi 0, %s112
    %s114 = sphi 0, %s112
    %s115 = sphi 0, %s114
    %s129 = sphi 0, %s115
    %s133 = sphi 0, %s133
    %s135 = sphi 0, %s133
    %s136 = sphi 0, %s135
    %s150 = sphi 0, %s136
    %s154 = sphi 0, %s154
    %s156 = sphi 0, %s154
    %s157 = sphi 0, %s156
    %s171 = sphi 0, %s157
    %s177 = sphi 0, %s179
    %s180 = sphi 0, %s177
    %s181 = sphi 0, %s180
    %s197 = sphi 0, %s181
    %s203 = sphi 0, %s205
    %s206 = sphi 0, %s203
    %s207 = sphi 0, %s206
    %s223 = sphi 0, %s207
  $region4: #{_forward_jit.1} parent=0 // loop_header_branch
    %18 = sbr.rel (%p16) target = $region8
  $region5: #{_forward_jit.1} parent=0 // loop_body
    %s20 = ssub.s32 %s15, 1
    %s21 = ssub.s32 %s15, 2
    %s22 = sadd.s32 %s15, 1
    %s23 = ssub.s32 %s15, %s22
    %p24 = scmp.eq.s32.totalorder %s23, 0
    %s26 = sadd.s32 %s25, 1
    %s27 = scalar_select %p24, %s25, %s26
    %p30 = pneg %p24
    %p31 = scmp.eq.s32.totalorder %s15, 1
    %p32 = por %p30, %p31
    %p33 = scmp.ne.s32.totalorder %s25, %s28
    %p34 = scmp.eq.s32.totalorder %s15, 0
    %p35 = por %p33, %p34
    %p36 = scmp.ne.s32.totalorder %s25, %s28
    %p37 = scmp.eq.s32.totalorder %s20, 1
    %p38 = por %p36, %p37
    %p39 = scmp.ne.s32.totalorder %s28, %s29
    %p40 = scmp.eq.s32.totalorder %s20, 0
    %p41 = por %p39, %p40
    %p42 = scmp.ne.s32.totalorder %s28, %s29
    %p43 = scmp.eq.s32.totalorder %s21, 1
    %p44 = por %p42, %p43
    %p46 = scmp.ne.s32.totalorder %s29, %s45
    %p47 = scmp.eq.s32.totalorder %s21, 0
    %p48 = por %p46, %p47
    %s50 = sadd.s32 %s49, 1
    %p53 = scmp.eq.s32.totalorder %s15, 1
    %p54 = scmp.ne.s32.totalorder %s49, %s51
    %p55 = scmp.eq.s32.totalorder %s15, 0
    %p56 = por %p54, %p55
    %p57 = scmp.ne.s32.totalorder %s49, %s51
    %p58 = scmp.eq.s32.totalorder %s20, 1
    %p59 = por %p57, %p58
    %p60 = scmp.ne.s32.totalorder %s51, %s52
    %p61 = scmp.eq.s32.totalorder %s20, 0
    %p62 = por %p60, %p61
    %p63 = scmp.ne.s32.totalorder %s51, %s52
    %p64 = scmp.eq.s32.totalorder %s21, 1
    %p65 = por %p63, %p64
    %p67 = scmp.ne.s32.totalorder %s52, %s66
    %p68 = scmp.eq.s32.totalorder %s21, 0
    %p69 = por %p67, %p68
    %s71 = sadd.s32 %s70, 1
    %p74 = scmp.eq.s32.totalorder %s15, 1
    %p75 = scmp.ne.s32.totalorder %s70, %s72
    %p76 = scmp.eq.s32.totalorder %s15, 0
    %p77 = por %p75, %p76
    %p78 = scmp.ne.s32.totalorder %s70, %s72
    %p79 = scmp.eq.s32.totalorder %s20, 1
    %p80 = por %p78, %p79
    %p81 = scmp.ne.s32.totalorder %s72, %s73
    %p82 = scmp.eq.s32.totalorder %s20, 0
    %p83 = por %p81, %p82
    %p84 = scmp.ne.s32.totalorder %s72, %s73
    %p85 = scmp.eq.s32.totalorder %s21, 1
    %p86 = por %p84, %p85
    %p88 = scmp.ne.s32.totalorder %s73, %s87
    %p89 = scmp.eq.s32.totalorder %s21, 0
    %p90 = por %p88, %p89
    %s92 = sadd.s32 %s91, 1
    %p95 = scmp.eq.s32.totalorder %s15, 1
    %p96 = scmp.ne.s32.totalorder %s91, %s93
    %p97 = scmp.eq.s32.totalorder %s15, 0
    %p98 = por %p96, %p97
    %p99 = scmp.ne.s32.totalorder %s91, %s93
    %p100 = scmp.eq.s32.totalorder %s20, 1
    %p101 = por %p99, %p100
    %p102 = scmp.ne.s32.totalorder %s93, %s94
    %p103 = scmp.eq.s32.totalorder %s20, 0
    %p104 = por %p102, %p103
    %p105 = scmp.ne.s32.totalorder %s93, %s94
    %p106 = scmp.eq.s32.totalorder %s21, 1
    %p107 = por %p105, %p106
    %p109 = scmp.ne.s32.totalorder %s94, %s108
    %p110 = scmp.eq.s32.totalorder %s21, 0
    %p111 = por %p109, %p110
    %s113 = sadd.s32 %s112, 1
    %p116 = scmp.eq.s32.totalorder %s15, 1
    %p117 = scmp.ne.s32.totalorder %s112, %s114
    %p118 = scmp.eq.s32.totalorder %s15, 0
    %p119 = por %p117, %p118
    %p120 = scmp.ne.s32.totalorder %s112, %s114
    %p121 = scmp.eq.s32.totalorder %s20, 1
    %p122 = por %p120, %p121
    %p123 = scmp.ne.s32.totalorder %s114, %s115
    %p124 = scmp.eq.s32.totalorder %s20, 0
    %p125 = por %p123, %p124
    %p126 = scmp.ne.s32.totalorder %s114, %s115
    %p127 = scmp.eq.s32.totalorder %s21, 1
    %p128 = por %p126, %p127
    %p130 = scmp.ne.s32.totalorder %s115, %s129
    %p131 = scmp.eq.s32.totalorder %s21, 0
    %p132 = por %p130, %p131
    %s134 = sadd.s32 %s133, 1
    %p137 = scmp.eq.s32.totalorder %s15, 1
    %p138 = scmp.ne.s32.totalorder %s133, %s135
    %p139 = scmp.eq.s32.totalorder %s15, 0
    %p140 = por %p138, %p139
    %p141 = scmp.ne.s32.totalorder %s133, %s135
    %p142 = scmp.eq.s32.totalorder %s20, 1
    %p143 = por %p141, %p142
    %p144 = scmp.ne.s32.totalorder %s135, %s136
    %p145 = scmp.eq.s32.totalorder %s20, 0
    %p146 = por %p144, %p145
    %p147 = scmp.ne.s32.totalorder %s135, %s136
    %p148 = scmp.eq.s32.totalorder %s21, 1
    %p149 = por %p147, %p148
    %p151 = scmp.ne.s32.totalorder %s136, %s150
    %p152 = scmp.eq.s32.totalorder %s21, 0
    %p153 = por %p151, %p152
    %s155 = sadd.s32 %s154, 1
    %p158 = scmp.eq.s32.totalorder %s15, 1
    %p159 = scmp.ne.s32.totalorder %s154, %s156
    %p160 = scmp.eq.s32.totalorder %s15, 0
    %p161 = por %p159, %p160
    %p162 = scmp.ne.s32.totalorder %s154, %s156
    %p163 = scmp.eq.s32.totalorder %s20, 1
    %p164 = por %p162, %p163
    %p165 = scmp.ne.s32.totalorder %s156, %s157
    %p166 = scmp.eq.s32.totalorder %s20, 0
    %p167 = por %p165, %p166
    %p168 = scmp.ne.s32.totalorder %s156, %s157
    %p169 = scmp.eq.s32.totalorder %s21, 1
    %p170 = por %p168, %p169
    %p172 = scmp.ne.s32.totalorder %s157, %s171
    %p173 = scmp.eq.s32.totalorder %s21, 0
    %p174 = por %p172, %p173
    %s175 = ssub.s32 %s15, %s22
    %p176 = scmp.eq.s32.totalorder %s175, 0
    %s178 = sadd.s32 %s177, 1
    %s179 = scalar_select %p176, %s177, %s178
    %p182 = pneg %p176
    %p183 = scmp.eq.s32.totalorder %s15, 1
    %p184 = por %p182, %p183
    %p185 = scmp.ne.s32.totalorder %s177, %s180
    %p186 = scmp.eq.s32.totalorder %s15, 0
    %p187 = por %p185, %p186
    %p188 = scmp.ne.s32.totalorder %s177, %s180
    %p189 = scmp.eq.s32.totalorder %s20, 1
    %p190 = por %p188, %p189
    %p191 = scmp.ne.s32.totalorder %s180, %s181
    %p192 = scmp.eq.s32.totalorder %s20, 0
    %p193 = por %p191, %p192
    %p194 = scmp.ne.s32.totalorder %s180, %s181
    %p195 = scmp.eq.s32.totalorder %s21, 1
    %p196 = por %p194, %p195
    %p198 = scmp.ne.s32.totalorder %s181, %s197
    %p199 = scmp.eq.s32.totalorder %s21, 0
    %p200 = por %p198, %p199
    %s201 = ssub.s32 %s15, %s22
    %p202 = scmp.eq.s32.totalorder %s201, 0
    %s204 = sadd.s32 %s203, 1
    %s205 = scalar_select %p202, %s203, %s204
    %p208 = pneg %p202
    %p209 = scmp.eq.s32.totalorder %s15, 1
    %p210 = por %p208, %p209
    %p211 = scmp.ne.s32.totalorder %s203, %s206
    %p212 = scmp.eq.s32.totalorder %s15, 0
    %p213 = por %p211, %p212
    %p214 = scmp.ne.s32.totalorder %s203, %s206
    %p215 = scmp.eq.s32.totalorder %s20, 1
    %p216 = por %p214, %p215
    %p217 = scmp.ne.s32.totalorder %s206, %s207
    %p218 = scmp.eq.s32.totalorder %s20, 0
    %p219 = por %p217, %p218
    %p220 = scmp.ne.s32.totalorder %s206, %s207
    %p221 = scmp.eq.s32.totalorder %s21, 1
    %p222 = por %p220, %p221
    %p224 = scmp.ne.s32.totalorder %s207, %s223
    %p225 = scmp.eq.s32.totalorder %s21, 0
    %p226 = por %p224, %p225
    %p227 = scmp.le.s32.totalorder 1, %s15
    %p228 = scmp.lt.s32.totalorder %s15, 3
    %p229 = pnand %p227, %p228
    %p230 = pneg %p229
    // Predicated region
    $region9: #{_forward_jit.1} parent=5 // pred_check
      _
    $region10: #{_forward_jit.1} parent=5 // pred_check_branch
      %232 = sbr.rel (%p229) target = $region12
    $region11: #{_forward_jit.1} parent=5 // pred_region
      %s233 = ssub.s32 %s15, 1
      // Predicated region
      $region13: #{_forward_jit.1} parent=11 // pred_check
        %p234 = pneg %p62
      $region14: #{_forward_jit.1} parent=11 // pred_check_branch
        %236 = sbr.rel (%p234) target = $region16
      $region15: #{_forward_jit.1} parent=11 // pred_region
        _
      $region16: #{_forward_jit.1} parent=11 // pred_fallthru
        _
      // Predicated region
      $region17: #{_forward_jit.1} parent=11 // pred_check
        %p237 = pneg %p83
      $region18: #{_forward_jit.1} parent=11 // pred_check_branch
        %239 = sbr.rel (%p237) target = $region20
      $region19: #{_forward_jit.1} parent=11 // pred_region
        _
      $region20: #{_forward_jit.1} parent=11 // pred_fallthru
        _
      // Predicated region
      $region21: #{_forward_jit.1} parent=11 // pred_check
        %p240 = pneg %p104
      $region22: #{_forward_jit.1} parent=11 // pred_check_branch
        %242 = sbr.rel (%p240) target = $region24
      $region23: #{_forward_jit.1} parent=11 // pred_region
        _
      $region24: #{_forward_jit.1} parent=11 // pred_fallthru
        _
      // Predicated region
      $region25: #{_forward_jit.1} parent=11 // pred_check
        %p243 = pneg %p125
      $region26: #{_forward_jit.1} parent=11 // pred_check_branch
        %245 = sbr.rel (%p243) target = $region28
      $region27: #{_forward_jit.1} parent=11 // pred_region
        _
      $region28: #{_forward_jit.1} parent=11 // pred_fallthru
        _
      // Predicated region
      $region29: #{_forward_jit.1} parent=11 // pred_check
        %p246 = pneg %p146
      $region30: #{_forward_jit.1} parent=11 // pred_check_branch
        %248 = sbr.rel (%p246) target = $region32
      $region31: #{_forward_jit.1} parent=11 // pred_region
        _
      $region32: #{_forward_jit.1} parent=11 // pred_fallthru
        _
      // Predicated region
      $region33: #{_forward_jit.1} parent=11 // pred_check
        %p249 = pneg %p167
      $region34: #{_forward_jit.1} parent=11 // pred_check_branch
        %251 = sbr.rel (%p249) target = $region36
      $region35: #{_forward_jit.1} parent=11 // pred_region
        _
      $region36: #{_forward_jit.1} parent=11 // pred_fallthru
        _
    $region12: #{_forward_jit.1} parent=5 // pred_fallthru
      _
    %p252 = scmp.lt.s32.totalorder %s15, 2
    // Predicated region
    $region37: #{_forward_jit.1} parent=5 // pred_check
      %p253 = pneg %p252
    $region38: #{_forward_jit.1} parent=5 // pred_check_branch
      %255 = sbr.rel (%p253) target = $region40
    $region39: #{_forward_jit.1} parent=5 // pred_region
      // Predicated region
      $region41: #{_forward_jit.1} parent=39 // pred_check
        %p256 = pneg %p35
      $region42: #{_forward_jit.1} parent=39 // pred_check_branch
        %258 = sbr.rel (%p256) target = $region44
      $region43: #{_forward_jit.1} parent=39 // pred_region
        %p259 = scmp.lt.s32.totalorder %s15, 1
        %s260 = scalar_select %p259, %s15, 1
        %s261 = smul.addr %s260, 32
        %s262 = smul.addr %s261, 4
        %s263 = scalar_lea.vmem %s0, %s262
      $region44: #{_forward_jit.1} parent=39 // pred_fallthru
        _
    $region40: #{_forward_jit.1} parent=5 // pred_fallthru
      _
    %p264 = scmp.le.s32.totalorder 1, %s15
    %p265 = scmp.lt.s32.totalorder %s15, 3
    %p266 = pnand %p264, %p265
    %p267 = pneg %p266
    // Predicated region
    $region45: #{_forward_jit.1} parent=5 // pred_check
      _
    $region46: #{_forward_jit.1} parent=5 // pred_check_branch
      %269 = sbr.rel (%p266) target = $region48
    $region47: #{_forward_jit.1} parent=5 // pred_region
      %s270 = ssub.s32 %s15, 1
      %p271 = scmp.lt.s32.totalorder %s20, 1
      %s272 = scalar_select %p271, %s20, 1
      %s273 = smul.addr %s272, 32
      %s274 = smul.addr %s273, 4
      %s275 = scalar_lea.vmem %s0, %s274
      %p276 = pneg %p41
      %p277 = pneg %p38
      %p278 = pneg %p62
      %p279 = pneg %p59
      %p280 = pneg %p83
      %p281 = pneg %p80
      %p282 = pneg %p104
      %p283 = pneg %p101
      %p284 = pneg %p125
      %p285 = pneg %p122
      %p286 = pneg %p146
      %p287 = pneg %p143
      %p288 = pneg %p167
      %p289 = pneg %p164
      %p290 = pneg %p193
      %p291 = pneg %p190
      %p292 = scmp.lt.s32.totalorder %s20, 1
      %s293 = scalar_select %p292, %s20, 1
      %s294 = smul.addr %s293, 32
      %s295 = smul.addr %s294, 8
      %s296 = scalar_lea.vmem %s7, %s295
      %p297 = pneg %p219
      %p298 = pneg %p216
      %p299 = scmp.lt.s32.totalorder %s20, 1
      %s300 = scalar_select %p299, %s20, 1
      %s301 = scalar_lea.vmem %s8, %s300
      %p302 = scmp.lt.s32.totalorder %s20, 1
      %s303 = scalar_select %p302, %s20, 1
      %s304 = smul.addr %s303, 32
      %s305 = smul.addr %s304, 4
      %s306 = scalar_lea.vmem %s0, %s305
      %p307 = scmp.lt.s32.totalorder %s20, 1
      %s308 = scalar_select %p307, %s20, 1
      %s309 = smul.addr %s308, 32
      %s310 = smul.addr %s309, 8
      %s311 = scalar_lea.vmem %s7, %s310
      %p312 = scmp.lt.s32.totalorder %s20, 1
      %s313 = scalar_select %p312, %s20, 1
      %s314 = scalar_lea.vmem %s8, %s313
      %v316 = vld [vmem:[%s306] sm:$0xf]
      %v317 = vld [vmem:[%s306 + $0x4] sm:$0xf]
      %v318 = vld [vmem:[%s306 + $0x8] sm:$0xf]
      %v319 = vld [vmem:[%s306 + $0xc] sm:$0xf]
      %v320 = vld [vmem:[%s306 + $0x10] sm:$0xf]
      %v321 = vld [vmem:[%s306 + $0x14] sm:$0xf]
      %v322 = vld [vmem:[%s306 + $0x18] sm:$0xf]
      %v323 = vld [vmem:[%s306 + $0x1c] sm:$0xf]
      %v324 = vld [vmem:[%s306 + $0x20] sm:$0xf]
      %v325 = vld [vmem:[%s306 + $0x24] sm:$0xf]
      %v326 = vld [vmem:[%s306 + $0x28] sm:$0xf]
      %v327 = vld [vmem:[%s306 + $0x2c] sm:$0xf]
      %v328 = vld [vmem:[%s306 + $0x30] sm:$0xf]
      %v329 = vld [vmem:[%s306 + $0x34] sm:$0xf]
      %v330 = vld [vmem:[%s306 + $0x38] sm:$0xf]
      %v331 = vld [vmem:[%s306 + $0x3c] sm:$0xf]
      %v332 = vld [vmem:[%s306 + $0x40] sm:$0xf]
      %v333 = vld [vmem:[%s306 + $0x44] sm:$0xf]
      %v334 = vld [vmem:[%s306 + $0x48] sm:$0xf]
      %v335 = vld [vmem:[%s306 + $0x4c] sm:$0xf]
      %v336 = vld [vmem:[%s306 + $0x50] sm:$0xf]
      %v337 = vld [vmem:[%s306 + $0x54] sm:$0xf]
      %v338 = vld [vmem:[%s306 + $0x58] sm:$0xf]
      %v339 = vld [vmem:[%s306 + $0x5c] sm:$0xf]
      %v340 = vld [vmem:[%s306 + $0x60] sm:$0xf]
      %v341 = vld [vmem:[%s306 + $0x64] sm:$0xf]
      %v342 = vld [vmem:[%s306 + $0x68] sm:$0xf]
      %v343 = vld [vmem:[%s306 + $0x6c] sm:$0xf]
      %v344 = vld [vmem:[%s306 + $0x70] sm:$0xf]
      %v345 = vld [vmem:[%s306 + $0x74] sm:$0xf]
      %v346 = vld [vmem:[%s306 + $0x78] sm:$0xf]
      %v347 = vld [vmem:[%s306 + $0x7c] sm:$0xf]
      %v348 = vld [vmem:[%s1] sm:$0xf]
      %v349 = vld [vmem:[%s1 + $0x4] sm:$0xf]
      %v350 = vld [vmem:[%s1 + $0x8] sm:$0xf]
      %v351 = vld [vmem:[%s1 + $0xc] sm:$0xf]
      %v352 = vld [vmem:[%s1 + $0x10] sm:$0xf]
      %v353 = vld [vmem:[%s1 + $0x14] sm:$0xf]
      %v354 = vld [vmem:[%s1 + $0x18] sm:$0xf]
      %v355 = vld [vmem:[%s1 + $0x1c] sm:$0xf]
      %v356 = vld [vmem:[%s1 + $0x20] sm:$0xf]
      %v357 = vld [vmem:[%s1 + $0x24] sm:$0xf]
      %v358 = vld [vmem:[%s1 + $0x28] sm:$0xf]
      %v359 = vld [vmem:[%s1 + $0x2c] sm:$0xf]
      %v360 = vld [vmem:[%s1 + $0x30] sm:$0xf]
      %v361 = vld [vmem:[%s1 + $0x34] sm:$0xf]
      %v362 = vld [vmem:[%s1 + $0x38] sm:$0xf]
      %v363 = vld [vmem:[%s1 + $0x3c] sm:$0xf]
      %v364 = vld [vmem:[%s3] sm:$0x1]
      %v366 = vlaneseq
      %v367 = vshrl.u32 %v366, 7
      %v368 = vsub.s32 0, %v367
      %v369 = vrot.slane %v364, %v368
      %v403 = vunpack.c.l.b16 %v316
      %v404 = vunpack.c.l.b16 %v317
      %v405 = vunpack.c.l.b16 %v318
      %v406 = vunpack.c.l.b16 %v319
      %v407 = vunpack.c.l.b16 %v320
      %v408 = vunpack.c.l.b16 %v321
      %v409 = vunpack.c.l.b16 %v322
      %v410 = vunpack.c.l.b16 %v323
      %v411 = vunpack.c.l.b16 %v324
      %v412 = vunpack.c.l.b16 %v325
      %v413 = vunpack.c.l.b16 %v326
      %v414 = vunpack.c.l.b16 %v327
      %v415 = vunpack.c.l.b16 %v328
      %v416 = vunpack.c.l.b16 %v329
      %v417 = vunpack.c.l.b16 %v330
      %v418 = vunpack.c.l.b16 %v331
      %v419 = vunpack.c.l.b16 %v332
      %v420 = vunpack.c.l.b16 %v333
      %v421 = vunpack.c.l.b16 %v334
      %v422 = vunpack.c.l.b16 %v335
      %v423 = vunpack.c.l.b16 %v336
      %v424 = vunpack.c.l.b16 %v337
      %v425 = vunpack.c.l.b16 %v338
      %v426 = vunpack.c.l.b16 %v339
      %v427 = vunpack.c.l.b16 %v340
      %v428 = vunpack.c.l.b16 %v341
      %v429 = vunpack.c.l.b16 %v342
      %v430 = vunpack.c.l.b16 %v343
      %v431 = vunpack.c.l.b16 %v344
      %v432 = vunpack.c.l.b16 %v345
      %v433 = vunpack.c.l.b16 %v346
      %v434 = vunpack.c.l.b16 %v347
      %v435 = vpack.c.b16 %v404, %v403
      %v436 = vpack.c.b16 %v406, %v405
      %v437 = vpack.c.b16 %v408, %v407
      %v438 = vpack.c.b16 %v410, %v409
      %v439 = vpack.c.b16 %v412, %v411
      %v440 = vpack.c.b16 %v414, %v413
      %v441 = vpack.c.b16 %v416, %v415
      %v442 = vpack.c.b16 %v418, %v417
      %v443 = vpack.c.b16 %v420, %v419
      %v444 = vpack.c.b16 %v422, %v421
      %v445 = vpack.c.b16 %v424, %v423
      %v446 = vpack.c.b16 %v426, %v425
      %v447 = vpack.c.b16 %v428, %v427
      %v448 = vpack.c.b16 %v430, %v429
      %v449 = vpack.c.b16 %v432, %v431
      %v450 = vpack.c.b16 %v434, %v433
      %v483 = vunpack.c.l.b16 %v348
      %v484 = vunpack.c.l.b16 %v349
      %v485 = vunpack.c.l.b16 %v350
      %v486 = vunpack.c.l.b16 %v351
      %v487 = vunpack.c.l.b16 %v352
      %v488 = vunpack.c.l.b16 %v353
      %v489 = vunpack.c.l.b16 %v354
      %v490 = vunpack.c.l.b16 %v355
      %v491 = vunpack.c.l.b16 %v356
      %v492 = vunpack.c.l.b16 %v357
      %v493 = vunpack.c.l.b16 %v358
      %v494 = vunpack.c.l.b16 %v359
      %v495 = vunpack.c.l.b16 %v360
      %v496 = vunpack.c.l.b16 %v361
      %v497 = vunpack.c.l.b16 %v362
      %v498 = vunpack.c.l.b16 %v363
      %v499 = vpack.c.b16 %v484, %v483
      %v500 = vpack.c.b16 %v486, %v485
      %v501 = vpack.c.b16 %v488, %v487
      %v502 = vpack.c.b16 %v490, %v489
      %v503 = vpack.c.b16 %v492, %v491
      %v504 = vpack.c.b16 %v494, %v493
      %v505 = vpack.c.b16 %v496, %v495
      %v506 = vpack.c.b16 %v498, %v497
      %515 = vmatprep.subr.bf16.mxu0 0
      %516 = vmatpush1.bf16.msra.mxu0 %v506
      %517 = vmatprep.subr.bf16.mxu0 0
      %518 = vmatpush1.bf16.msra.mxu0 %v505
      %519 = vmatprep.subr.bf16.mxu0 0
      %520 = vmatpush1.bf16.msra.mxu0 %v504
      %521 = vmatprep.subr.bf16.mxu0 0
      %522 = vmatpush1.bf16.msra.mxu0 %v503
      %523 = vmatprep.subr.bf16.mxu0 0
      %524 = vmatpush1.bf16.msra.mxu0 %v502
      %525 = vmatprep.subr.bf16.mxu0 0
      %526 = vmatpush1.bf16.msra.mxu0 %v501
      %527 = vmatprep.subr.bf16.mxu0 0
      %528 = vmatpush1.bf16.msra.mxu0 %v500
      %529 = vmatprep.subr.bf16.mxu0 0
      %530 = vmatpush1.bf16.msra.mxu0 %v499
      %531 = vmatprep.subr.bf16.mxu0 0
      %532 = vmatpush2.bf16.msra.mxu0 0
      %533 = vmatprep.subr.bf16.mxu0 0
      %534 = vmatpush2.bf16.msra.mxu0 0
      %535 = vmatprep.subr.bf16.mxu0 0
      %536 = vmatpush2.bf16.msra.mxu0 0
      %537 = vmatprep.subr.bf16.mxu0 0
      %538 = vmatpush2.bf16.msra.mxu0 0
      %539 = vmatprep.subr.bf16.mxu0 0
      %540 = vmatpush2.bf16.msra.mxu0 0
      %541 = vmatprep.subr.bf16.mxu0 0
      %542 = vmatpush2.bf16.msra.mxu0 0
      %543 = vmatprep.subr.bf16.mxu0 0
      %544 = vmatpush2.bf16.msra.mxu0 0
      %545 = vmatprep.subr.bf16.mxu0 0
      %546 = vmatpush2.bf16.msra.mxu0 0
      %547 = vmatprep.mubr.bf16.mxu0 0
      %548 = vmatmul.mubr.bf16.gmra.mxu0 %v435
      %v549 = vpop.f32.mrf.mxu0
      %v550 = vadd.f32 %v369, %v549
      %v551 = vpop.f32.mrf.mxu0
      %v552 = vpop.f32.mrf.mxu0
      %v553 = vadd.f32 %v369, %v552
      %v554 = vpop.f32.mrf.mxu0
      %555 = vmatprep.mubr.bf16.mxu0 0
      %556 = vmatmul.mubr.bf16.gmra.mxu0 %v436
      %v557 = vpop.f32.mrf.mxu0
      %v558 = vadd.f32 %v369, %v557
      %v559 = vpop.f32.mrf.mxu0
      %v560 = vpop.f32.mrf.mxu0
      %v561 = vadd.f32 %v369, %v560
      %v562 = vpop.f32.mrf.mxu0
      %563 = vmatprep.mubr.bf16.mxu0 0
      %564 = vmatmul.mubr.bf16.gmra.mxu0 %v437
      %v565 = vpop.f32.mrf.mxu0
      %v566 = vadd.f32 %v369, %v565
      %v567 = vpop.f32.mrf.mxu0
      %v568 = vpop.f32.mrf.mxu0
      %v569 = vadd.f32 %v369, %v568
      %v570 = vpop.f32.mrf.mxu0
      %571 = vmatprep.mubr.bf16.mxu0 0
      %572 = vmatmul.mubr.bf16.gmra.mxu0 %v438
      %v573 = vpop.f32.mrf.mxu0
      %v574 = vadd.f32 %v369, %v573
      %v575 = vpop.f32.mrf.mxu0
      %v576 = vpop.f32.mrf.mxu0
      %v577 = vadd.f32 %v369, %v576
      %v578 = vpop.f32.mrf.mxu0
      %579 = vmatprep.mubr.bf16.mxu0 0
      %580 = vmatmul.mubr.bf16.gmra.mxu0 %v439
      %v581 = vpop.f32.mrf.mxu0
      %v582 = vadd.f32 %v369, %v581
      %v583 = vpop.f32.mrf.mxu0
      %v584 = vpop.f32.mrf.mxu0
      %v585 = vadd.f32 %v369, %v584
      %v586 = vpop.f32.mrf.mxu0
      %587 = vmatprep.mubr.bf16.mxu0 0
      %588 = vmatmul.mubr.bf16.gmra.mxu0 %v440
      %v589 = vpop.f32.mrf.mxu0
      %v590 = vadd.f32 %v369, %v589
      %v591 = vpop.f32.mrf.mxu0
      %v592 = vpop.f32.mrf.mxu0
      %v593 = vadd.f32 %v369, %v592
      %v594 = vpop.f32.mrf.mxu0
      %595 = vmatprep.mubr.bf16.mxu0 0
      %596 = vmatmul.mubr.bf16.gmra.mxu0 %v441
      %v597 = vpop.f32.mrf.mxu0
      %v598 = vadd.f32 %v369, %v597
      %v599 = vpop.f32.mrf.mxu0
      %v600 = vpop.f32.mrf.mxu0
      %v601 = vadd.f32 %v369, %v600
      %v602 = vpop.f32.mrf.mxu0
      %603 = vmatprep.mubr.bf16.mxu0 0
      %604 = vmatmul.mubr.bf16.gmra.mxu0 %v442
      %v605 = vpop.f32.mrf.mxu0
      %v606 = vadd.f32 %v369, %v605
      %v607 = vpop.f32.mrf.mxu0
      %v608 = vpop.f32.mrf.mxu0
      %v609 = vadd.f32 %v369, %v608
      %v610 = vpop.f32.mrf.mxu0
      %611 = vmatprep.mubr.bf16.mxu0 0
      %612 = vmatmul.mubr.bf16.gmra.mxu0 %v443
      %v613 = vpop.f32.mrf.mxu0
      %v614 = vadd.f32 %v369, %v613
      %v615 = vpop.f32.mrf.mxu0
      %v616 = vpop.f32.mrf.mxu0
      %v617 = vadd.f32 %v369, %v616
      %v618 = vpop.f32.mrf.mxu0
      %619 = vmatprep.mubr.bf16.mxu0 0
      %620 = vmatmul.mubr.bf16.gmra.mxu0 %v444
      %v621 = vpop.f32.mrf.mxu0
      %v622 = vadd.f32 %v369, %v621
      %v623 = vpop.f32.mrf.mxu0
      %v624 = vpop.f32.mrf.mxu0
      %v625 = vadd.f32 %v369, %v624
      %v626 = vpop.f32.mrf.mxu0
      %627 = vmatprep.mubr.bf16.mxu0 0
      %628 = vmatmul.mubr.bf16.gmra.mxu0 %v445
      %v629 = vpop.f32.mrf.mxu0
      %v630 = vadd.f32 %v369, %v629
      %v631 = vpop.f32.mrf.mxu0
      %v632 = vpop.f32.mrf.mxu0
      %v633 = vadd.f32 %v369, %v632
      %v634 = vpop.f32.mrf.mxu0
      %635 = vmatprep.mubr.bf16.mxu0 0
      %636 = vmatmul.mubr.bf16.gmra.mxu0 %v446
      %v637 = vpop.f32.mrf.mxu0
      %v638 = vadd.f32 %v369, %v637
      %v639 = vpop.f32.mrf.mxu0
      %v640 = vpop.f32.mrf.mxu0
      %v641 = vadd.f32 %v369, %v640
      %v642 = vpop.f32.mrf.mxu0
      %643 = vmatprep.mubr.bf16.mxu0 0
      %644 = vmatmul.mubr.bf16.gmra.mxu0 %v447
      %v645 = vpop.f32.mrf.mxu0
      %v646 = vadd.f32 %v369, %v645
      %v647 = vpop.f32.mrf.mxu0
      %v648 = vpop.f32.mrf.mxu0
      %v649 = vadd.f32 %v369, %v648
      %v650 = vpop.f32.mrf.mxu0
      %651 = vmatprep.mubr.bf16.mxu0 0
      %652 = vmatmul.mubr.bf16.gmra.mxu0 %v448
      %v653 = vpop.f32.mrf.mxu0
      %v654 = vadd.f32 %v369, %v653
      %v655 = vpop.f32.mrf.mxu0
      %v656 = vpop.f32.mrf.mxu0
      %v657 = vadd.f32 %v369, %v656
      %v658 = vpop.f32.mrf.mxu0
      %659 = vmatprep.mubr.bf16.mxu0 0
      %660 = vmatmul.mubr.bf16.gmra.mxu0 %v449
      %v661 = vpop.f32.mrf.mxu0
      %v662 = vadd.f32 %v369, %v661
      %v663 = vpop.f32.mrf.mxu0
      %v664 = vpop.f32.mrf.mxu0
      %v665 = vadd.f32 %v369, %v664
      %v666 = vpop.f32.mrf.mxu0
      %667 = vmatprep.mubr.bf16.mxu0 0
      %668 = vmatmul.mubr.bf16.gmra.mxu0 %v450
      %v669 = vpop.f32.mrf.mxu0
      %v670 = vadd.f32 %v369, %v669
      %v671 = vpop.f32.mrf.mxu0
      %v672 = vpop.f32.mrf.mxu0
      %v673 = vadd.f32 %v369, %v672
      %v674 = vpop.f32.mrf.mxu0
      %675 = vdwg.mxu0
      %v676 = vmax.f32 %v550, 0.0
      %v677 = vmax.f32 %v553, 0.0
      %v678 = vmax.f32 %v558, 0.0
      %v679 = vmax.f32 %v561, 0.0
      %v680 = vmax.f32 %v566, 0.0
      %v681 = vmax.f32 %v569, 0.0
      %v682 = vmax.f32 %v574, 0.0
      %v683 = vmax.f32 %v577, 0.0
      %v684 = vmax.f32 %v582, 0.0
      %v685 = vmax.f32 %v585, 0.0
      %v686 = vmax.f32 %v590, 0.0
      %v687 = vmax.f32 %v593, 0.0
      %v688 = vmax.f32 %v598, 0.0
      %v689 = vmax.f32 %v601, 0.0
      %v690 = vmax.f32 %v606, 0.0
      %v691 = vmax.f32 %v609, 0.0
      %v692 = vmax.f32 %v614, 0.0
      %v693 = vmax.f32 %v617, 0.0
      %v694 = vmax.f32 %v622, 0.0
      %v695 = vmax.f32 %v625, 0.0
      %v696 = vmax.f32 %v630, 0.0
      %v697 = vmax.f32 %v633, 0.0
      %v698 = vmax.f32 %v638, 0.0
      %v699 = vmax.f32 %v641, 0.0
      %v700 = vmax.f32 %v646, 0.0
      %v701 = vmax.f32 %v649, 0.0
      %v702 = vmax.f32 %v654, 0.0
      %v703 = vmax.f32 %v657, 0.0
      %v704 = vmax.f32 %v662, 0.0
      %v705 = vmax.f32 %v665, 0.0
      %v706 = vmax.f32 %v670, 0.0
      %v707 = vmax.f32 %v673, 0.0
      %708 = vst [vmem:[#allocation2] sm:$0xff] %v676
      %709 = vst [vmem:[#allocation2 + $0x8] sm:$0xff] %v677
      %710 = vst [vmem:[#allocation2 + $0x10] sm:$0xff] %v678
      %711 = vst [vmem:[#allocation2 + $0x18] sm:$0xff] %v679
      %712 = vst [vmem:[#allocation2 + $0x20] sm:$0xff] %v680
      %713 = vst [vmem:[#allocation2 + $0x28] sm:$0xff] %v681
      %714 = vst [vmem:[#allocation2 + $0x30] sm:$0xff] %v682
      %715 = vst [vmem:[#allocation2 + $0x38] sm:$0xff] %v683
      %716 = vst [vmem:[#allocation2 + $0x40] sm:$0xff] %v684
      %717 = vst [vmem:[#allocation2 + $0x48] sm:$0xff] %v685
      %718 = vst [vmem:[#allocation2 + $0x50] sm:$0xff] %v686
      %719 = vst [vmem:[#allocation2 + $0x58] sm:$0xff] %v687
      %720 = vst [vmem:[#allocation2 + $0x60] sm:$0xff] %v688
      %721 = vst [vmem:[#allocation2 + $0x68] sm:$0xff] %v689
      %722 = vst [vmem:[#allocation2 + $0x70] sm:$0xff] %v690
      %723 = vst [vmem:[#allocation2 + $0x78] sm:$0xff] %v691
      %724 = vst [vmem:[#allocation2 + $0x80] sm:$0xff] %v692
      %725 = vst [vmem:[#allocation2 + $0x88] sm:$0xff] %v693
      %726 = vst [vmem:[#allocation2 + $0x90] sm:$0xff] %v694
      %727 = vst [vmem:[#allocation2 + $0x98] sm:$0xff] %v695
      %728 = vst [vmem:[#allocation2 + $0xa0] sm:$0xff] %v696
      %729 = vst [vmem:[#allocation2 + $0xa8] sm:$0xff] %v697
      %730 = vst [vmem:[#allocation2 + $0xb0] sm:$0xff] %v698
      %731 = vst [vmem:[#allocation2 + $0xb8] sm:$0xff] %v699
      %732 = vst [vmem:[#allocation2 + $0xc0] sm:$0xff] %v700
      %733 = vst [vmem:[#allocation2 + $0xc8] sm:$0xff] %v701
      %734 = vst [vmem:[#allocation2 + $0xd0] sm:$0xff] %v702
      %735 = vst [vmem:[#allocation2 + $0xd8] sm:$0xff] %v703
      %736 = vst [vmem:[#allocation2 + $0xe0] sm:$0xff] %v704
      %737 = vst [vmem:[#allocation2 + $0xe8] sm:$0xff] %v705
      %738 = vst [vmem:[#allocation2 + $0xf0] sm:$0xff] %v706
      %739 = vst [vmem:[#allocation2 + $0xf8] sm:$0xff] %v707
      loop: start=0, step=1, limit=16
      $region49: #{_forward_jit.1} parent=47 // loop_pre_header
        _
      $region50: #{_forward_jit.1} parent=47 // loop_header
        %s741 = sphi 0, %s745
        %p742 = scmp.ge.s32.totalorder %s741, 16
      $region51: #{_forward_jit.1} parent=47 // loop_header_branch
        %744 = sbr.rel (%p742) target = $region55
      $region52: #{_forward_jit.1} parent=47 // loop_body
        %v746 = vld [vmem:[#allocation2] sm:$0xff]
        %v747 = vld [vmem:[#allocation2 + $0x8] sm:$0xff]
        %v748 = vld [vmem:[#allocation2 + $0x10] sm:$0xff]
        %v749 = vld [vmem:[#allocation2 + $0x18] sm:$0xff]
        %v750 = vld [vmem:[#allocation2 + $0x20] sm:$0xff]
        %v751 = vld [vmem:[#allocation2 + $0x28] sm:$0xff]
        %v752 = vld [vmem:[#allocation2 + $0x30] sm:$0xff]
        %v753 = vld [vmem:[#allocation2 + $0x38] sm:$0xff]
        %v754 = vld [vmem:[#allocation2 + $0x40] sm:$0xff]
        %v755 = vld [vmem:[#allocation2 + $0x48] sm:$0xff]
        %v756 = vld [vmem:[#allocation2 + $0x50] sm:$0xff]
        %v757 = vld [vmem:[#allocation2 + $0x58] sm:$0xff]
        %v758 = vld [vmem:[#allocation2 + $0x60] sm:$0xff]
        %v759 = vld [vmem:[#allocation2 + $0x68] sm:$0xff]
        %v760 = vld [vmem:[#allocation2 + $0x70] sm:$0xff]
        %v761 = vld [vmem:[#allocation2 + $0x78] sm:$0xff]
        %v762 = vld [vmem:[#allocation2 + $0x80] sm:$0xff]
        %v763 = vld [vmem:[#allocation2 + $0x88] sm:$0xff]
        %v764 = vld [vmem:[#allocation2 + $0x90] sm:$0xff]
        %v765 = vld [vmem:[#allocation2 + $0x98] sm:$0xff]
        %v766 = vld [vmem:[#allocation2 + $0xa0] sm:$0xff]
        %v767 = vld [vmem:[#allocation2 + $0xa8] sm:$0xff]
        %v768 = vld [vmem:[#allocation2 + $0xb0] sm:$0xff]
        %v769 = vld [vmem:[#allocation2 + $0xb8] sm:$0xff]
        %v770 = vld [vmem:[#allocation2 + $0xc0] sm:$0xff]
        %v771 = vld [vmem:[#allocation2 + $0xc8] sm:$0xff]
        %v772 = vld [vmem:[#allocation2 + $0xd0] sm:$0xff]
        %v773 = vld [vmem:[#allocation2 + $0xd8] sm:$0xff]
        %v774 = vld [vmem:[#allocation2 + $0xe0] sm:$0xff]
        %v775 = vld [vmem:[#allocation2 + $0xe8] sm:$0xff]
        %v776 = vld [vmem:[#allocation2 + $0xf0] sm:$0xff]
        %v777 = vld [vmem:[#allocation2 + $0xf8] sm:$0xff]
        %v778 = vpack.c.bf16 %v747, %v746
        %v779 = vpack.c.bf16 %v749, %v748
        %v780 = vpack.c.bf16 %v751, %v750
        %v781 = vpack.c.bf16 %v753, %v752
        %v782 = vpack.c.bf16 %v755, %v754
        %v783 = vpack.c.bf16 %v757, %v756
        %v784 = vpack.c.bf16 %v759, %v758
        %v785 = vpack.c.bf16 %v761, %v760
        %v786 = vpack.c.bf16 %v763, %v762
        %v787 = vpack.c.bf16 %v765, %v764
        %v788 = vpack.c.bf16 %v767, %v766
        %v789 = vpack.c.bf16 %v769, %v768
        %v790 = vpack.c.bf16 %v771, %v770
        %v791 = vpack.c.bf16 %v773, %v772
        %v792 = vpack.c.bf16 %v775, %v774
        %v793 = vpack.c.bf16 %v777, %v776
        %v795 = vshrl.u32 %v778, 16
        %v797 = vrot.slane %v795, 7
        %v799 = vshrl.u32 %v779, 16
        %v801 = vrot.slane %v799, 7
        %v803 = vshrl.u32 %v780, 16
        %v805 = vrot.slane %v803, 7
        %v807 = vshrl.u32 %v781, 16
        %v809 = vrot.slane %v807, 7
        %v811 = vshrl.u32 %v782, 16
        %v813 = vrot.slane %v811, 7
        %v815 = vshrl.u32 %v783, 16
        %v817 = vrot.slane %v815, 7
        %v819 = vshrl.u32 %v784, 16
        %v821 = vrot.slane %v819, 7
        %v823 = vshrl.u32 %v785, 16
        %v825 = vrot.slane %v823, 7
        %v827 = vshrl.u32 %v786, 16
        %v829 = vrot.slane %v827, 7
        %v831 = vshrl.u32 %v787, 16
        %v833 = vrot.slane %v831, 7
        %v835 = vshrl.u32 %v788, 16
        %v837 = vrot.slane %v835, 7
        %v839 = vshrl.u32 %v789, 16
        %v841 = vrot.slane %v839, 7
        %v843 = vshrl.u32 %v790, 16
        %v845 = vrot.slane %v843, 7
        %v847 = vshrl.u32 %v791, 16
        %v849 = vrot.slane %v847, 7
        %v851 = vshrl.u32 %v792, 16
        %v853 = vrot.slane %v851, 7
        %v855 = vshrl.u32 %v793, 16
        %v857 = vrot.slane %v855, 7
        %v874 = vshll.u32 %v778, 16
        %v876 = vor.u32 %v797, %v874
        %v877 = vshll.u32 %v779, 16
        %v879 = vor.u32 %v801, %v877
        %v880 = vshll.u32 %v780, 16
        %v882 = vor.u32 %v805, %v880
        %v883 = vshll.u32 %v781, 16
        %v885 = vor.u32 %v809, %v883
        %v886 = vshll.u32 %v782, 16
        %v888 = vor.u32 %v813, %v886
        %v889 = vshll.u32 %v783, 16
        %v891 = vor.u32 %v817, %v889
        %v892 = vshll.u32 %v784, 16
        %v894 = vor.u32 %v821, %v892
        %v895 = vshll.u32 %v785, 16
        %v897 = vor.u32 %v825, %v895
        %v898 = vshll.u32 %v786, 16
        %v900 = vor.u32 %v829, %v898
        %v901 = vshll.u32 %v787, 16
        %v903 = vor.u32 %v833, %v901
        %v904 = vshll.u32 %v788, 16
        %v906 = vor.u32 %v837, %v904
        %v907 = vshll.u32 %v789, 16
        %v909 = vor.u32 %v841, %v907
        %v910 = vshll.u32 %v790, 16
        %v912 = vor.u32 %v845, %v910
        %v913 = vshll.u32 %v791, 16
        %v915 = vor.u32 %v849, %v913
        %v916 = vshll.u32 %v792, 16
        %v918 = vor.u32 %v853, %v916
        %v919 = vshll.u32 %v793, 16
        %v921 = vor.u32 %v857, %v919
        %vm954 = vcmask 1040384
        %vm955 = vsmask.f32 256
        %vm956 = vmand %vm954, %vm955
        %v957 = vsel %vm956, %v797, %v876
        %v958 = vsel %vm956, %v801, %v879
        %v959 = vsel %vm956, %v805, %v882
        %v960 = vsel %vm956, %v809, %v885
        %v961 = vsel %vm956, %v813, %v888
        %v962 = vsel %vm956, %v817, %v891
        %v963 = vsel %vm956, %v821, %v894
        %v964 = vsel %vm956, %v825, %v897
        %v965 = vsel %vm956, %v829, %v900
        %v966 = vsel %vm956, %v833, %v903
        %v967 = vsel %vm956, %v837, %v906
        %v968 = vsel %vm956, %v841, %v909
        %v969 = vsel %vm956, %v845, %v912
        %v970 = vsel %vm956, %v849, %v915
        %v971 = vsel %vm956, %v853, %v918
        %v972 = vsel %vm956, %v857, %v921
        %v973 = vsel %vm956, %v797, %v874
        %v974 = vsel %vm956, %v801, %v877
        %v975 = vsel %vm956, %v805, %v880
        %v976 = vsel %vm956, %v809, %v883
        %v977 = vsel %vm956, %v813, %v886
        %v978 = vsel %vm956, %v817, %v889
        %v979 = vsel %vm956, %v821, %v892
        %v980 = vsel %vm956, %v825, %v895
        %v981 = vsel %vm956, %v829, %v898
        %v982 = vsel %vm956, %v833, %v901
        %v983 = vsel %vm956, %v837, %v904
        %v984 = vsel %vm956, %v841, %v907
        %v985 = vsel %vm956, %v845, %v910
        %v986 = vsel %vm956, %v849, %v913
        %v987 = vsel %vm956, %v853, %v916
        %v988 = vsel %vm956, %v857, %v919
        %s989 = smul.u32 %s741, 144
        %s990 = smul.addr %s989, 4
        %s991 = scalar_lea.vmem %s2, %s990
        %v992 = vld [vmem:[%s991] sm:$0xf]
        %v993 = vld [vmem:[%s991 + $0x4] sm:$0xf]
        %v994 = vld [vmem:[%s991 + $0x8] sm:$0xf]
        %v995 = vld [vmem:[%s991 + $0xc] sm:$0xf]
        %v996 = vld [vmem:[%s991 + $0x10] sm:$0xf]
        %v997 = vld [vmem:[%s991 + $0x14] sm:$0xf]
        %v998 = vld [vmem:[%s991 + $0x18] sm:$0xf]
        %v999 = vld [vmem:[%s991 + $0x1c] sm:$0xf]
        %v1000 = vld [vmem:[%s991 + $0x20] sm:$0xf]
        %v1001 = vld [vmem:[%s991 + $0x24] sm:$0xf]
        %v1002 = vld [vmem:[%s991 + $0x28] sm:$0xf]
        %v1003 = vld [vmem:[%s991 + $0x2c] sm:$0xf]
        %v1004 = vld [vmem:[%s991 + $0x30] sm:$0xf]
        %v1005 = vld [vmem:[%s991 + $0x34] sm:$0xf]
        %v1006 = vld [vmem:[%s991 + $0x38] sm:$0xf]
        %v1007 = vld [vmem:[%s991 + $0x3c] sm:$0xf]
        %v1008 = vld [vmem:[%s991 + $0x40] sm:$0xf]
        %v1009 = vld [vmem:[%s991 + $0x44] sm:$0xf]
        %v1010 = vld [vmem:[%s991 + $0x48] sm:$0xf]
        %v1011 = vld [vmem:[%s991 + $0x4c] sm:$0xf]
        %v1012 = vld [vmem:[%s991 + $0x50] sm:$0xf]
        %v1013 = vld [vmem:[%s991 + $0x54] sm:$0xf]
        %v1014 = vld [vmem:[%s991 + $0x58] sm:$0xf]
        %v1015 = vld [vmem:[%s991 + $0x5c] sm:$0xf]
        %v1016 = vld [vmem:[%s991 + $0x60] sm:$0xf]
        %v1017 = vld [vmem:[%s991 + $0x64] sm:$0xf]
        %v1018 = vld [vmem:[%s991 + $0x68] sm:$0xf]
        %v1019 = vld [vmem:[%s991 + $0x6c] sm:$0xf]
        %v1020 = vld [vmem:[%s991 + $0x70] sm:$0xf]
        %v1021 = vld [vmem:[%s991 + $0x74] sm:$0xf]
        %v1022 = vld [vmem:[%s991 + $0x78] sm:$0xf]
        %v1023 = vld [vmem:[%s991 + $0x7c] sm:$0xf]
        %v1024 = vld [vmem:[%s991 + $0x80] sm:$0xf]
        %v1025 = vld [vmem:[%s991 + $0x84] sm:$0xf]
        %v1026 = vld [vmem:[%s991 + $0x88] sm:$0xf]
        %v1027 = vld [vmem:[%s991 + $0x8c] sm:$0xf]
        %v1028 = vld [vmem:[%s991 + $0x90] sm:$0xf]
        %v1029 = vld [vmem:[%s991 + $0x94] sm:$0xf]
        %v1030 = vld [vmem:[%s991 + $0x98] sm:$0xf]
        %v1031 = vld [vmem:[%s991 + $0x9c] sm:$0xf]
        %v1032 = vld [vmem:[%s991 + $0xa0] sm:$0xf]
        %v1033 = vld [vmem:[%s991 + $0xa4] sm:$0xf]
        %v1034 = vld [vmem:[%s991 + $0xa8] sm:$0xf]
        %v1035 = vld [vmem:[%s991 + $0xac] sm:$0xf]
        %v1036 = vld [vmem:[%s991 + $0xb0] sm:$0xf]
        %v1037 = vld [vmem:[%s991 + $0xb4] sm:$0xf]
        %v1038 = vld [vmem:[%s991 + $0xb8] sm:$0xf]
        %v1039 = vld [vmem:[%s991 + $0xbc] sm:$0xf]
        %v1040 = vld [vmem:[%s991 + $0xc0] sm:$0xf]
        %v1041 = vld [vmem:[%s991 + $0xc4] sm:$0xf]
        %v1042 = vld [vmem:[%s991 + $0xc8] sm:$0xf]
        %v1043 = vld [vmem:[%s991 + $0xcc] sm:$0xf]
        %v1044 = vld [vmem:[%s991 + $0xd0] sm:$0xf]
        %v1045 = vld [vmem:[%s991 + $0xd4] sm:$0xf]
        %v1046 = vld [vmem:[%s991 + $0xd8] sm:$0xf]
        %v1047 = vld [vmem:[%s991 + $0xdc] sm:$0xf]
        %v1048 = vld [vmem:[%s991 + $0xe0] sm:$0xf]
        %v1049 = vld [vmem:[%s991 + $0xe4] sm:$0xf]
        %v1050 = vld [vmem:[%s991 + $0xe8] sm:$0xf]
        %v1051 = vld [vmem:[%s991 + $0xec] sm:$0xf]
        %v1052 = vld [vmem:[%s991 + $0xf0] sm:$0xf]
        %v1053 = vld [vmem:[%s991 + $0xf4] sm:$0xf]
        %v1054 = vld [vmem:[%s991 + $0xf8] sm:$0xf]
        %v1055 = vld [vmem:[%s991 + $0xfc] sm:$0xf]
        %v1056 = vld [vmem:[%s991 + $0x100] sm:$0xf]
        %v1057 = vld [vmem:[%s991 + $0x104] sm:$0xf]
        %v1058 = vld [vmem:[%s991 + $0x108] sm:$0xf]
        %v1059 = vld [vmem:[%s991 + $0x10c] sm:$0xf]
        %v1060 = vld [vmem:[%s991 + $0x110] sm:$0xf]
        %v1061 = vld [vmem:[%s991 + $0x114] sm:$0xf]
        %v1062 = vld [vmem:[%s991 + $0x118] sm:$0xf]
        %v1063 = vld [vmem:[%s991 + $0x11c] sm:$0xf]
        %v1064 = vld [vmem:[%s991 + $0x120] sm:$0xf]
        %v1065 = vld [vmem:[%s991 + $0x124] sm:$0xf]
        %v1066 = vld [vmem:[%s991 + $0x128] sm:$0xf]
        %v1067 = vld [vmem:[%s991 + $0x12c] sm:$0xf]
        %v1068 = vld [vmem:[%s991 + $0x130] sm:$0xf]
        %v1069 = vld [vmem:[%s991 + $0x134] sm:$0xf]
        %v1070 = vld [vmem:[%s991 + $0x138] sm:$0xf]
        %v1071 = vld [vmem:[%s991 + $0x13c] sm:$0xf]
        %v1072 = vld [vmem:[%s991 + $0x140] sm:$0xf]
        %v1073 = vld [vmem:[%s991 + $0x144] sm:$0xf]
        %v1074 = vld [vmem:[%s991 + $0x148] sm:$0xf]
        %v1075 = vld [vmem:[%s991 + $0x14c] sm:$0xf]
        %v1076 = vld [vmem:[%s991 + $0x150] sm:$0xf]
        %v1077 = vld [vmem:[%s991 + $0x154] sm:$0xf]
        %v1078 = vld [vmem:[%s991 + $0x158] sm:$0xf]
        %v1079 = vld [vmem:[%s991 + $0x15c] sm:$0xf]
        %v1080 = vld [vmem:[%s991 + $0x160] sm:$0xf]
        %v1081 = vld [vmem:[%s991 + $0x164] sm:$0xf]
        %v1082 = vld [vmem:[%s991 + $0x168] sm:$0xf]
        %v1083 = vld [vmem:[%s991 + $0x16c] sm:$0xf]
        %v1084 = vld [vmem:[%s991 + $0x170] sm:$0xf]
        %v1085 = vld [vmem:[%s991 + $0x174] sm:$0xf]
        %v1086 = vld [vmem:[%s991 + $0x178] sm:$0xf]
        %v1087 = vld [vmem:[%s991 + $0x17c] sm:$0xf]
        %v1088 = vld [vmem:[%s991 + $0x180] sm:$0xf]
        %v1089 = vld [vmem:[%s991 + $0x184] sm:$0xf]
        %v1090 = vld [vmem:[%s991 + $0x188] sm:$0xf]
        %v1091 = vld [vmem:[%s991 + $0x18c] sm:$0xf]
        %v1092 = vld [vmem:[%s991 + $0x190] sm:$0xf]
        %v1093 = vld [vmem:[%s991 + $0x194] sm:$0xf]
        %v1094 = vld [vmem:[%s991 + $0x198] sm:$0xf]
        %v1095 = vld [vmem:[%s991 + $0x19c] sm:$0xf]
        %v1096 = vld [vmem:[%s991 + $0x1a0] sm:$0xf]
        %v1097 = vld [vmem:[%s991 + $0x1a4] sm:$0xf]
        %v1098 = vld [vmem:[%s991 + $0x1a8] sm:$0xf]
        %v1099 = vld [vmem:[%s991 + $0x1ac] sm:$0xf]
        %v1100 = vld [vmem:[%s991 + $0x1b0] sm:$0xf]
        %v1101 = vld [vmem:[%s991 + $0x1b4] sm:$0xf]
        %v1102 = vld [vmem:[%s991 + $0x1b8] sm:$0xf]
        %v1103 = vld [vmem:[%s991 + $0x1bc] sm:$0xf]
        %v1104 = vld [vmem:[%s991 + $0x1c0] sm:$0xf]
        %v1105 = vld [vmem:[%s991 + $0x1c4] sm:$0xf]
        %v1106 = vld [vmem:[%s991 + $0x1c8] sm:$0xf]
        %v1107 = vld [vmem:[%s991 + $0x1cc] sm:$0xf]
        %v1108 = vld [vmem:[%s991 + $0x1d0] sm:$0xf]
        %v1109 = vld [vmem:[%s991 + $0x1d4] sm:$0xf]
        %v1110 = vld [vmem:[%s991 + $0x1d8] sm:$0xf]
        %v1111 = vld [vmem:[%s991 + $0x1dc] sm:$0xf]
        %v1112 = vld [vmem:[%s991 + $0x1e0] sm:$0xf]
        %v1113 = vld [vmem:[%s991 + $0x1e4] sm:$0xf]
        %v1114 = vld [vmem:[%s991 + $0x1e8] sm:$0xf]
        %v1115 = vld [vmem:[%s991 + $0x1ec] sm:$0xf]
        %v1116 = vld [vmem:[%s991 + $0x1f0] sm:$0xf]
        %v1117 = vld [vmem:[%s991 + $0x1f4] sm:$0xf]
        %v1118 = vld [vmem:[%s991 + $0x1f8] sm:$0xf]
        %v1119 = vld [vmem:[%s991 + $0x1fc] sm:$0xf]
        %v1120 = vld [vmem:[%s991 + $0x200] sm:$0xf]
        %v1121 = vld [vmem:[%s991 + $0x204] sm:$0xf]
        %v1122 = vld [vmem:[%s991 + $0x208] sm:$0xf]
        %v1123 = vld [vmem:[%s991 + $0x20c] sm:$0xf]
        %v1124 = vld [vmem:[%s991 + $0x210] sm:$0xf]
        %v1125 = vld [vmem:[%s991 + $0x214] sm:$0xf]
        %v1126 = vld [vmem:[%s991 + $0x218] sm:$0xf]
        %v1127 = vld [vmem:[%s991 + $0x21c] sm:$0xf]
        %v1128 = vld [vmem:[%s991 + $0x220] sm:$0xf]
        %v1129 = vld [vmem:[%s991 + $0x224] sm:$0xf]
        %v1130 = vld [vmem:[%s991 + $0x228] sm:$0xf]
        %v1131 = vld [vmem:[%s991 + $0x22c] sm:$0xf]
        %v1132 = vld [vmem:[%s991 + $0x230] sm:$0xf]
        %v1133 = vld [vmem:[%s991 + $0x234] sm:$0xf]
        %v1134 = vld [vmem:[%s991 + $0x238] sm:$0xf]
        %v1135 = vld [vmem:[%s991 + $0x23c] sm:$0xf]
        %vm1136 = vsmask.f32 7424
        %v1138 = vshrl.u32 %v972, 16
        %v1140 = vshll.u32 %v972, 16
        %v1142 = vrot.slane %v1140, 1
        %v1143 = vor.u32 %v1138, %v1142
        %v1145 = vshll.u32 %v988, 16
        %v1147 = vrot.slane %v1145, 1
        %v1148 = vsel %vm1136, %v1143, %v1147
        %v1150 = vshrl.u32 %v957, 16
        %v1152 = vshll.u32 %v957, 16
        %v1154 = vrot.slane %v1152, 1
        %v1155 = vor.u32 %v1150, %v1154
        %v1157 = vshll.u32 %v973, 16
        %v1159 = vrot.slane %v1157, 1
        %v1160 = vsel %vm1136, %v1155, %v1159
        %v1162 = vshrl.u32 %v958, 16
        %v1164 = vshll.u32 %v958, 16
        %v1166 = vrot.slane %v1164, 1
        %v1167 = vor.u32 %v1162, %v1166
        %v1169 = vshll.u32 %v974, 16
        %v1171 = vrot.slane %v1169, 1
        %v1172 = vsel %vm1136, %v1167, %v1171
        %v1174 = vshrl.u32 %v959, 16
        %v1176 = vshll.u32 %v959, 16
        %v1178 = vrot.slane %v1176, 1
        %v1179 = vor.u32 %v1174, %v1178
        %v1181 = vshll.u32 %v975, 16
        %v1183 = vrot.slane %v1181, 1
        %v1184 = vsel %vm1136, %v1179, %v1183
        %v1186 = vshrl.u32 %v960, 16
        %v1188 = vshll.u32 %v960, 16
        %v1190 = vrot.slane %v1188, 1
        %v1191 = vor.u32 %v1186, %v1190
        %v1193 = vshll.u32 %v976, 16
        %v1195 = vrot.slane %v1193, 1
        %v1196 = vsel %vm1136, %v1191, %v1195
        %v1198 = vshrl.u32 %v961, 16
        %v1200 = vshll.u32 %v961, 16
        %v1202 = vrot.slane %v1200, 1
        %v1203 = vor.u32 %v1198, %v1202
        %v1205 = vshll.u32 %v977, 16
        %v1207 = vrot.slane %v1205, 1
        %v1208 = vsel %vm1136, %v1203, %v1207
        %v1210 = vshrl.u32 %v962, 16
        %v1212 = vshll.u32 %v962, 16
        %v1214 = vrot.slane %v1212, 1
        %v1215 = vor.u32 %v1210, %v1214
        %v1217 = vshll.u32 %v978, 16
        %v1219 = vrot.slane %v1217, 1
        %v1220 = vsel %vm1136, %v1215, %v1219
        %v1222 = vshrl.u32 %v963, 16
        %v1224 = vshll.u32 %v963, 16
        %v1226 = vrot.slane %v1224, 1
        %v1227 = vor.u32 %v1222, %v1226
        %v1229 = vshll.u32 %v979, 16
        %v1231 = vrot.slane %v1229, 1
        %v1232 = vsel %vm1136, %v1227, %v1231
        %v1234 = vshrl.u32 %v964, 16
        %v1236 = vshll.u32 %v964, 16
        %v1238 = vrot.slane %v1236, 1
        %v1239 = vor.u32 %v1234, %v1238
        %v1241 = vshll.u32 %v980, 16
        %v1243 = vrot.slane %v1241, 1
        %v1244 = vsel %vm1136, %v1239, %v1243
        %v1246 = vshrl.u32 %v965, 16
        %v1248 = vshll.u32 %v965, 16
        %v1250 = vrot.slane %v1248, 1
        %v1251 = vor.u32 %v1246, %v1250
        %v1253 = vshll.u32 %v981, 16
        %v1255 = vrot.slane %v1253, 1
        %v1256 = vsel %vm1136, %v1251, %v1255
        %v1258 = vshrl.u32 %v966, 16
        %v1260 = vshll.u32 %v966, 16
        %v1262 = vrot.slane %v1260, 1
        %v1263 = vor.u32 %v1258, %v1262
        %v1265 = vshll.u32 %v982, 16
        %v1267 = vrot.slane %v1265, 1
        %v1268 = vsel %vm1136, %v1263, %v1267
        %v1270 = vshrl.u32 %v967, 16
        %v1272 = vshll.u32 %v967, 16
        %v1274 = vrot.slane %v1272, 1
        %v1275 = vor.u32 %v1270, %v1274
        %v1277 = vshll.u32 %v983, 16
        %v1279 = vrot.slane %v1277, 1
        %v1280 = vsel %vm1136, %v1275, %v1279
        %v1282 = vshrl.u32 %v968, 16
        %v1284 = vshll.u32 %v968, 16
        %v1286 = vrot.slane %v1284, 1
        %v1287 = vor.u32 %v1282, %v1286
        %v1289 = vshll.u32 %v984, 16
        %v1291 = vrot.slane %v1289, 1
        %v1292 = vsel %vm1136, %v1287, %v1291
        %v1294 = vshrl.u32 %v969, 16
        %v1296 = vshll.u32 %v969, 16
        %v1298 = vrot.slane %v1296, 1
        %v1299 = vor.u32 %v1294, %v1298
        %v1301 = vshll.u32 %v985, 16
        %v1303 = vrot.slane %v1301, 1
        %v1304 = vsel %vm1136, %v1299, %v1303
        %v1306 = vshrl.u32 %v970, 16
        %v1308 = vshll.u32 %v970, 16
        %v1310 = vrot.slane %v1308, 1
        %v1311 = vor.u32 %v1306, %v1310
        %v1313 = vshll.u32 %v986, 16
        %v1315 = vrot.slane %v1313, 1
        %v1316 = vsel %vm1136, %v1311, %v1315
        %v1318 = vshrl.u32 %v971, 16
        %v1320 = vshll.u32 %v971, 16
        %v1322 = vrot.slane %v1320, 1
        %v1323 = vor.u32 %v1318, %v1322
        %v1325 = vshll.u32 %v987, 16
        %v1327 = vrot.slane %v1325, 1
        %v1328 = vsel %vm1136, %v1323, %v1327
        %vm1377 = vcmask 1046528
        %v1378 = vrot.slane %v972, 1
        %v1379 = vrot.slane %v988, 1
        %v1380 = vsel %vm1377, %v1378, %v1379
        %v1381 = vrot.slane %v957, 1
        %v1382 = vrot.slane %v973, 1
        %v1383 = vsel %vm1377, %v1381, %v1382
        %v1384 = vrot.slane %v958, 1
        %v1385 = vrot.slane %v974, 1
        %v1386 = vsel %vm1377, %v1384, %v1385
        %v1387 = vrot.slane %v959, 1
        %v1388 = vrot.slane %v975, 1
        %v1389 = vsel %vm1377, %v1387, %v1388
        %v1390 = vrot.slane %v960, 1
        %v1391 = vrot.slane %v976, 1
        %v1392 = vsel %vm1377, %v1390, %v1391
        %v1393 = vrot.slane %v961, 1
        %v1394 = vrot.slane %v977, 1
        %v1395 = vsel %vm1377, %v1393, %v1394
        %v1396 = vrot.slane %v962, 1
        %v1397 = vrot.slane %v978, 1
        %v1398 = vsel %vm1377, %v1396, %v1397
        %v1399 = vrot.slane %v963, 1
        %v1400 = vrot.slane %v979, 1
        %v1401 = vsel %vm1377, %v1399, %v1400
        %v1402 = vrot.slane %v964, 1
        %v1403 = vrot.slane %v980, 1
        %v1404 = vsel %vm1377, %v1402, %v1403
        %v1405 = vrot.slane %v965, 1
        %v1406 = vrot.slane %v981, 1
        %v1407 = vsel %vm1377, %v1405, %v1406
        %v1408 = vrot.slane %v966, 1
        %v1409 = vrot.slane %v982, 1
        %v1410 = vsel %vm1377, %v1408, %v1409
        %v1411 = vrot.slane %v967, 1
        %v1412 = vrot.slane %v983, 1
        %v1413 = vsel %vm1377, %v1411, %v1412
        %v1414 = vrot.slane %v968, 1
        %v1415 = vrot.slane %v984, 1
        %v1416 = vsel %vm1377, %v1414, %v1415
        %v1417 = vrot.slane %v969, 1
        %v1418 = vrot.slane %v985, 1
        %v1419 = vsel %vm1377, %v1417, %v1418
        %v1420 = vrot.slane %v970, 1
        %v1421 = vrot.slane %v986, 1
        %v1422 = vsel %vm1377, %v1420, %v1421
        %v1423 = vrot.slane %v971, 1
        %v1424 = vrot.slane %v987, 1
        %v1425 = vsel %vm1377, %v1423, %v1424
        %s1442 = sadd.s32 %s741, 1
        %s1443 = scalar_lea.vmem %s3, %s1442
        %v1444 = vld [vmem:[%s1443] sm:$0x1]
        %v1446 = vlaneseq
        %v1447 = vshrl.u32 %v1446, 7
        %v1448 = vsub.s32 0, %v1447
        %v1449 = vrot.slane %v1444, %v1448
        %v1595 = vunpack.c.l.b16 %v992
        %v1596 = vunpack.c.l.b16 %v993
        %v1597 = vunpack.c.l.b16 %v994
        %v1598 = vunpack.c.l.b16 %v995
        %v1599 = vunpack.c.l.b16 %v996
        %v1600 = vunpack.c.l.b16 %v997
        %v1601 = vunpack.c.l.b16 %v998
        %v1602 = vunpack.c.l.b16 %v999
        %v1603 = vunpack.c.l.b16 %v1000
        %v1604 = vunpack.c.l.b16 %v1001
        %v1605 = vunpack.c.l.b16 %v1002
        %v1606 = vunpack.c.l.b16 %v1003
        %v1607 = vunpack.c.l.b16 %v1004
        %v1608 = vunpack.c.l.b16 %v1005
        %v1609 = vunpack.c.l.b16 %v1006
        %v1610 = vunpack.c.l.b16 %v1007
        %v1611 = vunpack.c.l.b16 %v1008
        %v1612 = vunpack.c.l.b16 %v1009
        %v1613 = vunpack.c.l.b16 %v1010
        %v1614 = vunpack.c.l.b16 %v1011
        %v1615 = vunpack.c.l.b16 %v1012
        %v1616 = vunpack.c.l.b16 %v1013
        %v1617 = vunpack.c.l.b16 %v1014
        %v1618 = vunpack.c.l.b16 %v1015
        %v1619 = vunpack.c.l.b16 %v1016
        %v1620 = vunpack.c.l.b16 %v1017
        %v1621 = vunpack.c.l.b16 %v1018
        %v1622 = vunpack.c.l.b16 %v1019
        %v1623 = vunpack.c.l.b16 %v1020
        %v1624 = vunpack.c.l.b16 %v1021
        %v1625 = vunpack.c.l.b16 %v1022
        %v1626 = vunpack.c.l.b16 %v1023
        %v1627 = vunpack.c.l.b16 %v1024
        %v1628 = vunpack.c.l.b16 %v1025
        %v1629 = vunpack.c.l.b16 %v1026
        %v1630 = vunpack.c.l.b16 %v1027
        %v1631 = vunpack.c.l.b16 %v1028
        %v1632 = vunpack.c.l.b16 %v1029
        %v1633 = vunpack.c.l.b16 %v1030
        %v1634 = vunpack.c.l.b16 %v1031
        %v1635 = vunpack.c.l.b16 %v1032
        %v1636 = vunpack.c.l.b16 %v1033
        %v1637 = vunpack.c.l.b16 %v1034
        %v1638 = vunpack.c.l.b16 %v1035
        %v1639 = vunpack.c.l.b16 %v1036
        %v1640 = vunpack.c.l.b16 %v1037
        %v1641 = vunpack.c.l.b16 %v1038
        %v1642 = vunpack.c.l.b16 %v1039
        %v1643 = vunpack.c.l.b16 %v1040
        %v1644 = vunpack.c.l.b16 %v1041
        %v1645 = vunpack.c.l.b16 %v1042
        %v1646 = vunpack.c.l.b16 %v1043
        %v1647 = vunpack.c.l.b16 %v1044
        %v1648 = vunpack.c.l.b16 %v1045
        %v1649 = vunpack.c.l.b16 %v1046
        %v1650 = vunpack.c.l.b16 %v1047
        %v1651 = vunpack.c.l.b16 %v1048
        %v1652 = vunpack.c.l.b16 %v1049
        %v1653 = vunpack.c.l.b16 %v1050
        %v1654 = vunpack.c.l.b16 %v1051
        %v1655 = vunpack.c.l.b16 %v1052
        %v1656 = vunpack.c.l.b16 %v1053
        %v1657 = vunpack.c.l.b16 %v1054
        %v1658 = vunpack.c.l.b16 %v1055
        %v1659 = vunpack.c.l.b16 %v1056
        %v1660 = vunpack.c.l.b16 %v1057
        %v1661 = vunpack.c.l.b16 %v1058
        %v1662 = vunpack.c.l.b16 %v1059
        %v1663 = vunpack.c.l.b16 %v1060
        %v1664 = vunpack.c.l.b16 %v1061
        %v1665 = vunpack.c.l.b16 %v1062
        %v1666 = vunpack.c.l.b16 %v1063
        %v1667 = vunpack.c.l.b16 %v1064
        %v1668 = vunpack.c.l.b16 %v1065
        %v1669 = vunpack.c.l.b16 %v1066
        %v1670 = vunpack.c.l.b16 %v1067
        %v1671 = vunpack.c.l.b16 %v1068
        %v1672 = vunpack.c.l.b16 %v1069
        %v1673 = vunpack.c.l.b16 %v1070
        %v1674 = vunpack.c.l.b16 %v1071
        %v1675 = vunpack.c.l.b16 %v1072
        %v1676 = vunpack.c.l.b16 %v1073
        %v1677 = vunpack.c.l.b16 %v1074
        %v1678 = vunpack.c.l.b16 %v1075
        %v1679 = vunpack.c.l.b16 %v1076
        %v1680 = vunpack.c.l.b16 %v1077
        %v1681 = vunpack.c.l.b16 %v1078
        %v1682 = vunpack.c.l.b16 %v1079
        %v1683 = vunpack.c.l.b16 %v1080
        %v1684 = vunpack.c.l.b16 %v1081
        %v1685 = vunpack.c.l.b16 %v1082
        %v1686 = vunpack.c.l.b16 %v1083
        %v1687 = vunpack.c.l.b16 %v1084
        %v1688 = vunpack.c.l.b16 %v1085
        %v1689 = vunpack.c.l.b16 %v1086
        %v1690 = vunpack.c.l.b16 %v1087
        %v1691 = vunpack.c.l.b16 %v1088
        %v1692 = vunpack.c.l.b16 %v1089
        %v1693 = vunpack.c.l.b16 %v1090
        %v1694 = vunpack.c.l.b16 %v1091
        %v1695 = vunpack.c.l.b16 %v1092
        %v1696 = vunpack.c.l.b16 %v1093
        %v1697 = vunpack.c.l.b16 %v1094
        %v1698 = vunpack.c.l.b16 %v1095
        %v1699 = vunpack.c.l.b16 %v1096
        %v1700 = vunpack.c.l.b16 %v1097
        %v1701 = vunpack.c.l.b16 %v1098
        %v1702 = vunpack.c.l.b16 %v1099
        %v1703 = vunpack.c.l.b16 %v1100
        %v1704 = vunpack.c.l.b16 %v1101
        %v1705 = vunpack.c.l.b16 %v1102
        %v1706 = vunpack.c.l.b16 %v1103
        %v1707 = vunpack.c.l.b16 %v1104
        %v1708 = vunpack.c.l.b16 %v1105
        %v1709 = vunpack.c.l.b16 %v1106
        %v1710 = vunpack.c.l.b16 %v1107
        %v1711 = vunpack.c.l.b16 %v1108
        %v1712 = vunpack.c.l.b16 %v1109
        %v1713 = vunpack.c.l.b16 %v1110
        %v1714 = vunpack.c.l.b16 %v1111
        %v1715 = vunpack.c.l.b16 %v1112
        %v1716 = vunpack.c.l.b16 %v1113
        %v1717 = vunpack.c.l.b16 %v1114
        %v1718 = vunpack.c.l.b16 %v1115
        %v1719 = vunpack.c.l.b16 %v1116
        %v1720 = vunpack.c.l.b16 %v1117
        %v1721 = vunpack.c.l.b16 %v1118
        %v1722 = vunpack.c.l.b16 %v1119
        %v1723 = vunpack.c.l.b16 %v1120
        %v1724 = vunpack.c.l.b16 %v1121
        %v1725 = vunpack.c.l.b16 %v1122
        %v1726 = vunpack.c.l.b16 %v1123
        %v1727 = vunpack.c.l.b16 %v1124
        %v1728 = vunpack.c.l.b16 %v1125
        %v1729 = vunpack.c.l.b16 %v1126
        %v1730 = vunpack.c.l.b16 %v1127
        %v1731 = vunpack.c.l.b16 %v1128
        %v1732 = vunpack.c.l.b16 %v1129
        %v1733 = vunpack.c.l.b16 %v1130
        %v1734 = vunpack.c.l.b16 %v1131
        %v1735 = vunpack.c.l.b16 %v1132
        %v1736 = vunpack.c.l.b16 %v1133
        %v1737 = vunpack.c.l.b16 %v1134
        %v1738 = vunpack.c.l.b16 %v1135
        %v1739 = vpack.c.b16 %v1596, %v1595
        %v1740 = vpack.c.b16 %v1598, %v1597
        %v1741 = vpack.c.b16 %v1600, %v1599
        %v1742 = vpack.c.b16 %v1602, %v1601
        %v1743 = vpack.c.b16 %v1604, %v1603
        %v1744 = vpack.c.b16 %v1606, %v1605
        %v1745 = vpack.c.b16 %v1608, %v1607
        %v1746 = vpack.c.b16 %v1610, %v1609
        %v1747 = vpack.c.b16 %v1612, %v1611
        %v1748 = vpack.c.b16 %v1614, %v1613
        %v1749 = vpack.c.b16 %v1616, %v1615
        %v1750 = vpack.c.b16 %v1618, %v1617
        %v1751 = vpack.c.b16 %v1620, %v1619
        %v1752 = vpack.c.b16 %v1622, %v1621
        %v1753 = vpack.c.b16 %v1624, %v1623
        %v1754 = vpack.c.b16 %v1626, %v1625
        %v1755 = vpack.c.b16 %v1628, %v1627
        %v1756 = vpack.c.b16 %v1630, %v1629
        %v1757 = vpack.c.b16 %v1632, %v1631
        %v1758 = vpack.c.b16 %v1634, %v1633
        %v1759 = vpack.c.b16 %v1636, %v1635
        %v1760 = vpack.c.b16 %v1638, %v1637
        %v1761 = vpack.c.b16 %v1640, %v1639
        %v1762 = vpack.c.b16 %v1642, %v1641
        %v1763 = vpack.c.b16 %v1644, %v1643
        %v1764 = vpack.c.b16 %v1646, %v1645
        %v1765 = vpack.c.b16 %v1648, %v1647
        %v1766 = vpack.c.b16 %v1650, %v1649
        %v1767 = vpack.c.b16 %v1652, %v1651
        %v1768 = vpack.c.b16 %v1654, %v1653
        %v1769 = vpack.c.b16 %v1656, %v1655
        %v1770 = vpack.c.b16 %v1658, %v1657
        %v1771 = vpack.c.b16 %v1660, %v1659
        %v1772 = vpack.c.b16 %v1662, %v1661
        %v1773 = vpack.c.b16 %v1664, %v1663
        %v1774 = vpack.c.b16 %v1666, %v1665
        %v1775 = vpack.c.b16 %v1668, %v1667
        %v1776 = vpack.c.b16 %v1670, %v1669
        %v1777 = vpack.c.b16 %v1672, %v1671
        %v1778 = vpack.c.b16 %v1674, %v1673
        %v1779 = vpack.c.b16 %v1676, %v1675
        %v1780 = vpack.c.b16 %v1678, %v1677
        %v1781 = vpack.c.b16 %v1680, %v1679
        %v1782 = vpack.c.b16 %v1682, %v1681
        %v1783 = vpack.c.b16 %v1684, %v1683
        %v1784 = vpack.c.b16 %v1686, %v1685
        %v1785 = vpack.c.b16 %v1688, %v1687
        %v1786 = vpack.c.b16 %v1690, %v1689
        %v1787 = vpack.c.b16 %v1692, %v1691
        %v1788 = vpack.c.b16 %v1694, %v1693
        %v1789 = vpack.c.b16 %v1696, %v1695
        %v1790 = vpack.c.b16 %v1698, %v1697
        %v1791 = vpack.c.b16 %v1700, %v1699
        %v1792 = vpack.c.b16 %v1702, %v1701
        %v1793 = vpack.c.b16 %v1704, %v1703
        %v1794 = vpack.c.b16 %v1706, %v1705
        %v1795 = vpack.c.b16 %v1708, %v1707
        %v1796 = vpack.c.b16 %v1710, %v1709
        %v1797 = vpack.c.b16 %v1712, %v1711
        %v1798 = vpack.c.b16 %v1714, %v1713
        %v1799 = vpack.c.b16 %v1716, %v1715
        %v1800 = vpack.c.b16 %v1718, %v1717
        %v1801 = vpack.c.b16 %v1720, %v1719
        %v1802 = vpack.c.b16 %v1722, %v1721
        %v1803 = vpack.c.b16 %v1724, %v1723
        %v1804 = vpack.c.b16 %v1726, %v1725
        %v1805 = vpack.c.b16 %v1728, %v1727
        %v1806 = vpack.c.b16 %v1730, %v1729
        %v1807 = vpack.c.b16 %v1732, %v1731
        %v1808 = vpack.c.b16 %v1734, %v1733
        %v1809 = vpack.c.b16 %v1736, %v1735
        %v1810 = vpack.c.b16 %v1738, %v1737
        %1883 = vmatprep.subr.bf16.mxu0 0
        %1884 = vmatpush1.bf16.msra.mxu0 %v1746
        %1885 = vmatprep.subr.bf16.mxu0 0
        %1886 = vmatpush1.bf16.msra.mxu0 %v1745
        %1887 = vmatprep.subr.bf16.mxu0 0
        %1888 = vmatpush1.bf16.msra.mxu0 %v1744
        %1889 = vmatprep.subr.bf16.mxu0 0
        %1890 = vmatpush1.bf16.msra.mxu0 %v1743
        %1891 = vmatprep.subr.bf16.mxu0 0
        %1892 = vmatpush1.bf16.msra.mxu0 %v1742
        %1893 = vmatprep.subr.bf16.mxu0 0
        %1894 = vmatpush1.bf16.msra.mxu0 %v1741
        %1895 = vmatprep.subr.bf16.mxu0 0
        %1896 = vmatpush1.bf16.msra.mxu0 %v1740
        %1897 = vmatprep.subr.bf16.mxu0 0
        %1898 = vmatpush1.bf16.msra.mxu0 %v1739
        %1899 = vmatprep.subr.bf16.mxu0 0
        %1900 = vmatpush2.bf16.msra.mxu0 %v1754
        %1901 = vmatprep.subr.bf16.mxu0 0
        %1902 = vmatpush2.bf16.msra.mxu0 %v1753
        %1903 = vmatprep.subr.bf16.mxu0 0
        %1904 = vmatpush2.bf16.msra.mxu0 %v1752
        %1905 = vmatprep.subr.bf16.mxu0 0
        %1906 = vmatpush2.bf16.msra.mxu0 %v1751
        %1907 = vmatprep.subr.bf16.mxu0 0
        %1908 = vmatpush2.bf16.msra.mxu0 %v1750
        %1909 = vmatprep.subr.bf16.mxu0 0
        %1910 = vmatpush2.bf16.msra.mxu0 %v1749
        %1911 = vmatprep.subr.bf16.mxu0 0
        %1912 = vmatpush2.bf16.msra.mxu0 %v1748
        %1913 = vmatprep.subr.bf16.mxu0 0
        %1914 = vmatpush2.bf16.msra.mxu0 %v1747
        %1915 = vmatprep.mubr.bf16.mxu0 %v1148
        %1916 = vmatmul.mubr.bf16.gmra.mxu0 %v972
        %v1917 = vpop.f32.mrf.mxu0
        %v1918 = vadd.f32 %v1449, %v1917
        %v1919 = vpop.f32.mrf.mxu0
        %v1920 = vpop.f32.mrf.mxu0
        %v1921 = vadd.f32 %v1449, %v1920
        %v1922 = vpop.f32.mrf.mxu0
        %1923 = vmatprep.mubr.bf16.mxu0 %v1160
        %1924 = vmatmul.mubr.bf16.gmra.mxu0 %v957
        %v1925 = vpop.f32.mrf.mxu0
        %v1926 = vadd.f32 %v1449, %v1925
        %v1927 = vpop.f32.mrf.mxu0
        %v1928 = vpop.f32.mrf.mxu0
        %v1929 = vadd.f32 %v1449, %v1928
        %v1930 = vpop.f32.mrf.mxu0
        %1931 = vmatprep.mubr.bf16.mxu0 %v1172
        %1932 = vmatmul.mubr.bf16.gmra.mxu0 %v958
        %v1933 = vpop.f32.mrf.mxu0
        %v1934 = vadd.f32 %v1449, %v1933
        %v1935 = vpop.f32.mrf.mxu0
        %v1936 = vpop.f32.mrf.mxu0
        %v1937 = vadd.f32 %v1449, %v1936
        %v1938 = vpop.f32.mrf.mxu0
        %1939 = vmatprep.mubr.bf16.mxu0 %v1184
        %1940 = vmatmul.mubr.bf16.gmra.mxu0 %v959
        %v1941 = vpop.f32.mrf.mxu0
        %v1942 = vadd.f32 %v1449, %v1941
        %v1943 = vpop.f32.mrf.mxu0
        %v1944 = vpop.f32.mrf.mxu0
        %v1945 = vadd.f32 %v1449, %v1944
        %v1946 = vpop.f32.mrf.mxu0
        %1947 = vmatprep.mubr.bf16.mxu0 %v1196
        %1948 = vmatmul.mubr.bf16.gmra.mxu0 %v960
        %v1949 = vpop.f32.mrf.mxu0
        %v1950 = vadd.f32 %v1449, %v1949
        %v1951 = vpop.f32.mrf.mxu0
        %v1952 = vpop.f32.mrf.mxu0
        %v1953 = vadd.f32 %v1449, %v1952
        %v1954 = vpop.f32.mrf.mxu0
        %1955 = vmatprep.mubr.bf16.mxu0 %v1208
        %1956 = vmatmul.mubr.bf16.gmra.mxu0 %v961
        %v1957 = vpop.f32.mrf.mxu0
        %v1958 = vadd.f32 %v1449, %v1957
        %v1959 = vpop.f32.mrf.mxu0
        %v1960 = vpop.f32.mrf.mxu0
        %v1961 = vadd.f32 %v1449, %v1960
        %v1962 = vpop.f32.mrf.mxu0
        %1963 = vmatprep.mubr.bf16.mxu0 %v1220
        %1964 = vmatmul.mubr.bf16.gmra.mxu0 %v962
        %v1965 = vpop.f32.mrf.mxu0
        %v1966 = vadd.f32 %v1449, %v1965
        %v1967 = vpop.f32.mrf.mxu0
        %v1968 = vpop.f32.mrf.mxu0
        %v1969 = vadd.f32 %v1449, %v1968
        %v1970 = vpop.f32.mrf.mxu0
        %1971 = vmatprep.mubr.bf16.mxu0 %v1232
        %1972 = vmatmul.mubr.bf16.gmra.mxu0 %v963
        %v1973 = vpop.f32.mrf.mxu0
        %v1974 = vadd.f32 %v1449, %v1973
        %v1975 = vpop.f32.mrf.mxu0
        %v1976 = vpop.f32.mrf.mxu0
        %v1977 = vadd.f32 %v1449, %v1976
        %v1978 = vpop.f32.mrf.mxu0
        %1979 = vmatprep.mubr.bf16.mxu0 %v1244
        %1980 = vmatmul.mubr.bf16.gmra.mxu0 %v964
        %v1981 = vpop.f32.mrf.mxu0
        %v1982 = vadd.f32 %v1449, %v1981
        %v1983 = vpop.f32.mrf.mxu0
        %v1984 = vpop.f32.mrf.mxu0
        %v1985 = vadd.f32 %v1449, %v1984
        %v1986 = vpop.f32.mrf.mxu0
        %1987 = vmatprep.mubr.bf16.mxu0 %v1256
        %1988 = vmatmul.mubr.bf16.gmra.mxu0 %v965
        %v1989 = vpop.f32.mrf.mxu0
        %v1990 = vadd.f32 %v1449, %v1989
        %v1991 = vpop.f32.mrf.mxu0
        %v1992 = vpop.f32.mrf.mxu0
        %v1993 = vadd.f32 %v1449, %v1992
        %v1994 = vpop.f32.mrf.mxu0
        %1995 = vmatprep.mubr.bf16.mxu0 %v1268
        %1996 = vmatmul.mubr.bf16.gmra.mxu0 %v966
        %v1997 = vpop.f32.mrf.mxu0
        %v1998 = vadd.f32 %v1449, %v1997
        %v1999 = vpop.f32.mrf.mxu0
        %v2000 = vpop.f32.mrf.mxu0
        %v2001 = vadd.f32 %v1449, %v2000
        %v2002 = vpop.f32.mrf.mxu0
        %2003 = vmatprep.mubr.bf16.mxu0 %v1280
        %2004 = vmatmul.mubr.bf16.gmra.mxu0 %v967
        %v2005 = vpop.f32.mrf.mxu0
        %v2006 = vadd.f32 %v1449, %v2005
        %v2007 = vpop.f32.mrf.mxu0
        %v2008 = vpop.f32.mrf.mxu0
        %v2009 = vadd.f32 %v1449, %v2008
        %v2010 = vpop.f32.mrf.mxu0
        %2011 = vmatprep.mubr.bf16.mxu0 %v1292
        %2012 = vmatmul.mubr.bf16.gmra.mxu0 %v968
        %v2013 = vpop.f32.mrf.mxu0
        %v2014 = vadd.f32 %v1449, %v2013
        %v2015 = vpop.f32.mrf.mxu0
        %v2016 = vpop.f32.mrf.mxu0
        %v2017 = vadd.f32 %v1449, %v2016
        %v2018 = vpop.f32.mrf.mxu0
        %2019 = vmatprep.mubr.bf16.mxu0 %v1304
        %2020 = vmatmul.mubr.bf16.gmra.mxu0 %v969
        %v2021 = vpop.f32.mrf.mxu0
        %v2022 = vadd.f32 %v1449, %v2021
        %v2023 = vpop.f32.mrf.mxu0
        %v2024 = vpop.f32.mrf.mxu0
        %v2025 = vadd.f32 %v1449, %v2024
        %v2026 = vpop.f32.mrf.mxu0
        %2027 = vmatprep.mubr.bf16.mxu0 %v1316
        %2028 = vmatmul.mubr.bf16.gmra.mxu0 %v970
        %v2029 = vpop.f32.mrf.mxu0
        %v2030 = vadd.f32 %v1449, %v2029
        %v2031 = vpop.f32.mrf.mxu0
        %v2032 = vpop.f32.mrf.mxu0
        %v2033 = vadd.f32 %v1449, %v2032
        %v2034 = vpop.f32.mrf.mxu0
        %2035 = vmatprep.mubr.bf16.mxu0 %v1328
        %2036 = vmatmul.mubr.bf16.gmra.mxu0 %v971
        %v2037 = vpop.f32.mrf.mxu0
        %v2038 = vadd.f32 %v1449, %v2037
        %v2039 = vpop.f32.mrf.mxu0
        %v2040 = vpop.f32.mrf.mxu0
        %v2041 = vadd.f32 %v1449, %v2040
        %v2042 = vpop.f32.mrf.mxu0
        %2043 = vdwg.mxu0
        %2044 = vmatprep.subr.bf16.mxu0 0
        %2045 = vmatpush1.bf16.msra.mxu0 %v1762
        %2046 = vmatprep.subr.bf16.mxu0 0
        %2047 = vmatpush1.bf16.msra.mxu0 %v1761
        %2048 = vmatprep.subr.bf16.mxu0 0
        %2049 = vmatpush1.bf16.msra.mxu0 %v1760
        %2050 = vmatprep.subr.bf16.mxu0 0
        %2051 = vmatpush1.bf16.msra.mxu0 %v1759
        %2052 = vmatprep.subr.bf16.mxu0 0
        %2053 = vmatpush1.bf16.msra.mxu0 %v1758
        %2054 = vmatprep.subr.bf16.mxu0 0
        %2055 = vmatpush1.bf16.msra.mxu0 %v1757
        %2056 = vmatprep.subr.bf16.mxu0 0
        %2057 = vmatpush1.bf16.msra.mxu0 %v1756
        %2058 = vmatprep.subr.bf16.mxu0 0
        %2059 = vmatpush1.bf16.msra.mxu0 %v1755
        %2060 = vmatprep.subr.bf16.mxu0 0
        %2061 = vmatpush2.bf16.msra.mxu0 %v1770
        %2062 = vmatprep.subr.bf16.mxu0 0
        %2063 = vmatpush2.bf16.msra.mxu0 %v1769
        %2064 = vmatprep.subr.bf16.mxu0 0
        %2065 = vmatpush2.bf16.msra.mxu0 %v1768
        %2066 = vmatprep.subr.bf16.mxu0 0
        %2067 = vmatpush2.bf16.msra.mxu0 %v1767
        %2068 = vmatprep.subr.bf16.mxu0 0
        %2069 = vmatpush2.bf16.msra.mxu0 %v1766
        %2070 = vmatprep.subr.bf16.mxu0 0
        %2071 = vmatpush2.bf16.msra.mxu0 %v1765
        %2072 = vmatprep.subr.bf16.mxu0 0
        %2073 = vmatpush2.bf16.msra.mxu0 %v1764
        %2074 = vmatprep.subr.bf16.mxu0 0
        %2075 = vmatpush2.bf16.msra.mxu0 %v1763
        %2076 = vmatprep.mubr.bf16.mxu0 %v957
        %2077 = vmatmul.mubr.bf16.gmra.mxu0 %v1380
        %v2078 = vpop.f32.mrf.mxu0
        %v2079 = vadd.f32 %v1918, %v2078
        %v2080 = vpop.f32.mrf.mxu0
        %v2081 = vpop.f32.mrf.mxu0
        %v2082 = vadd.f32 %v1921, %v2081
        %v2083 = vpop.f32.mrf.mxu0
        %2084 = vmatprep.mubr.bf16.mxu0 %v958
        %2085 = vmatmul.mubr.bf16.gmra.mxu0 %v1383
        %v2086 = vpop.f32.mrf.mxu0
        %v2087 = vadd.f32 %v1926, %v2086
        %v2088 = vpop.f32.mrf.mxu0
        %v2089 = vpop.f32.mrf.mxu0
        %v2090 = vadd.f32 %v1929, %v2089
        %v2091 = vpop.f32.mrf.mxu0
        %2092 = vmatprep.mubr.bf16.mxu0 %v959
        %2093 = vmatmul.mubr.bf16.gmra.mxu0 %v1386
        %v2094 = vpop.f32.mrf.mxu0
        %v2095 = vadd.f32 %v1934, %v2094
        %v2096 = vpop.f32.mrf.mxu0
        %v2097 = vpop.f32.mrf.mxu0
        %v2098 = vadd.f32 %v1937, %v2097
        %v2099 = vpop.f32.mrf.mxu0
        %2100 = vmatprep.mubr.bf16.mxu0 %v960
        %2101 = vmatmul.mubr.bf16.gmra.mxu0 %v1389
        %v2102 = vpop.f32.mrf.mxu0
        %v2103 = vadd.f32 %v1942, %v2102
        %v2104 = vpop.f32.mrf.mxu0
        %v2105 = vpop.f32.mrf.mxu0
        %v2106 = vadd.f32 %v1945, %v2105
        %v2107 = vpop.f32.mrf.mxu0
        %2108 = vmatprep.mubr.bf16.mxu0 %v961
        %2109 = vmatmul.mubr.bf16.gmra.mxu0 %v1392
        %v2110 = vpop.f32.mrf.mxu0
        %v2111 = vadd.f32 %v1950, %v2110
        %v2112 = vpop.f32.mrf.mxu0
        %v2113 = vpop.f32.mrf.mxu0
        %v2114 = vadd.f32 %v1953, %v2113
        %v2115 = vpop.f32.mrf.mxu0
        %2116 = vmatprep.mubr.bf16.mxu0 %v962
        %2117 = vmatmul.mubr.bf16.gmra.mxu0 %v1395
        %v2118 = vpop.f32.mrf.mxu0
        %v2119 = vadd.f32 %v1958, %v2118
        %v2120 = vpop.f32.mrf.mxu0
        %v2121 = vpop.f32.mrf.mxu0
        %v2122 = vadd.f32 %v1961, %v2121
        %v2123 = vpop.f32.mrf.mxu0
        %2124 = vmatprep.mubr.bf16.mxu0 %v963
        %2125 = vmatmul.mubr.bf16.gmra.mxu0 %v1398
        %v2126 = vpop.f32.mrf.mxu0
        %v2127 = vadd.f32 %v1966, %v2126
        %v2128 = vpop.f32.mrf.mxu0
        %v2129 = vpop.f32.mrf.mxu0
        %v2130 = vadd.f32 %v1969, %v2129
        %v2131 = vpop.f32.mrf.mxu0
        %2132 = vmatprep.mubr.bf16.mxu0 %v964
        %2133 = vmatmul.mubr.bf16.gmra.mxu0 %v1401
        %v2134 = vpop.f32.mrf.mxu0
        %v2135 = vadd.f32 %v1974, %v2134
        %v2136 = vpop.f32.mrf.mxu0
        %v2137 = vpop.f32.mrf.mxu0
        %v2138 = vadd.f32 %v1977, %v2137
        %v2139 = vpop.f32.mrf.mxu0
        %2140 = vmatprep.mubr.bf16.mxu0 %v965
        %2141 = vmatmul.mubr.bf16.gmra.mxu0 %v1404
        %v2142 = vpop.f32.mrf.mxu0
        %v2143 = vadd.f32 %v1982, %v2142
        %v2144 = vpop.f32.mrf.mxu0
        %v2145 = vpop.f32.mrf.mxu0
        %v2146 = vadd.f32 %v1985, %v2145
        %v2147 = vpop.f32.mrf.mxu0
        %2148 = vmatprep.mubr.bf16.mxu0 %v966
        %2149 = vmatmul.mubr.bf16.gmra.mxu0 %v1407
        %v2150 = vpop.f32.mrf.mxu0
        %v2151 = vadd.f32 %v1990, %v2150
        %v2152 = vpop.f32.mrf.mxu0
        %v2153 = vpop.f32.mrf.mxu0
        %v2154 = vadd.f32 %v1993, %v2153
        %v2155 = vpop.f32.mrf.mxu0
        %2156 = vmatprep.mubr.bf16.mxu0 %v967
        %2157 = vmatmul.mubr.bf16.gmra.mxu0 %v1410
        %v2158 = vpop.f32.mrf.mxu0
        %v2159 = vadd.f32 %v1998, %v2158
        %v2160 = vpop.f32.mrf.mxu0
        %v2161 = vpop.f32.mrf.mxu0
        %v2162 = vadd.f32 %v2001, %v2161
        %v2163 = vpop.f32.mrf.mxu0
        %2164 = vmatprep.mubr.bf16.mxu0 %v968
        %2165 = vmatmul.mubr.bf16.gmra.mxu0 %v1413
        %v2166 = vpop.f32.mrf.mxu0
        %v2167 = vadd.f32 %v2006, %v2166
        %v2168 = vpop.f32.mrf.mxu0
        %v2169 = vpop.f32.mrf.mxu0
        %v2170 = vadd.f32 %v2009, %v2169
        %v2171 = vpop.f32.mrf.mxu0
        %2172 = vmatprep.mubr.bf16.mxu0 %v969
        %2173 = vmatmul.mubr.bf16.gmra.mxu0 %v1416
        %v2174 = vpop.f32.mrf.mxu0
        %v2175 = vadd.f32 %v2014, %v2174
        %v2176 = vpop.f32.mrf.mxu0
        %v2177 = vpop.f32.mrf.mxu0
        %v2178 = vadd.f32 %v2017, %v2177
        %v2179 = vpop.f32.mrf.mxu0
        %2180 = vmatprep.mubr.bf16.mxu0 %v970
        %2181 = vmatmul.mubr.bf16.gmra.mxu0 %v1419
        %v2182 = vpop.f32.mrf.mxu0
        %v2183 = vadd.f32 %v2022, %v2182
        %v2184 = vpop.f32.mrf.mxu0
        %v2185 = vpop.f32.mrf.mxu0
        %v2186 = vadd.f32 %v2025, %v2185
        %v2187 = vpop.f32.mrf.mxu0
        %2188 = vmatprep.mubr.bf16.mxu0 %v971
        %2189 = vmatmul.mubr.bf16.gmra.mxu0 %v1422
        %v2190 = vpop.f32.mrf.mxu0
        %v2191 = vadd.f32 %v2030, %v2190
        %v2192 = vpop.f32.mrf.mxu0
        %v2193 = vpop.f32.mrf.mxu0
        %v2194 = vadd.f32 %v2033, %v2193
        %v2195 = vpop.f32.mrf.mxu0
        %2196 = vmatprep.mubr.bf16.mxu0 %v972
        %2197 = vmatmul.mubr.bf16.gmra.mxu0 %v1425
        %v2198 = vpop.f32.mrf.mxu0
        %v2199 = vadd.f32 %v2038, %v2198
        %v2200 = vpop.f32.mrf.mxu0
        %v2201 = vpop.f32.mrf.mxu0
        %v2202 = vadd.f32 %v2041, %v2201
        %v2203 = vpop.f32.mrf.mxu0
        %2204 = vdwg.mxu0
        %2205 = vmatprep.subr.bf16.mxu0 0
        %2206 = vmatpush1.bf16.msra.mxu0 %v1778
        %2207 = vmatprep.subr.bf16.mxu0 0
        %2208 = vmatpush1.bf16.msra.mxu0 %v1777
        %2209 = vmatprep.subr.bf16.mxu0 0
        %2210 = vmatpush1.bf16.msra.mxu0 %v1776
        %2211 = vmatprep.subr.bf16.mxu0 0
        %2212 = vmatpush1.bf16.msra.mxu0 %v1775
        %2213 = vmatprep.subr.bf16.mxu0 0
        %2214 = vmatpush1.bf16.msra.mxu0 %v1774
        %2215 = vmatprep.subr.bf16.mxu0 0
        %2216 = vmatpush1.bf16.msra.mxu0 %v1773
        %2217 = vmatprep.subr.bf16.mxu0 0
        %2218 = vmatpush1.bf16.msra.mxu0 %v1772
        %2219 = vmatprep.subr.bf16.mxu0 0
        %2220 = vmatpush1.bf16.msra.mxu0 %v1771
        %2221 = vmatprep.subr.bf16.mxu0 0
        %2222 = vmatpush2.bf16.msra.mxu0 %v1786
        %2223 = vmatprep.subr.bf16.mxu0 0
        %2224 = vmatpush2.bf16.msra.mxu0 %v1785
        %2225 = vmatprep.subr.bf16.mxu0 0
        %2226 = vmatpush2.bf16.msra.mxu0 %v1784
        %2227 = vmatprep.subr.bf16.mxu0 0
        %2228 = vmatpush2.bf16.msra.mxu0 %v1783
        %2229 = vmatprep.subr.bf16.mxu0 0
        %2230 = vmatpush2.bf16.msra.mxu0 %v1782
        %2231 = vmatprep.subr.bf16.mxu0 0
        %2232 = vmatpush2.bf16.msra.mxu0 %v1781
        %2233 = vmatprep.subr.bf16.mxu0 0
        %2234 = vmatpush2.bf16.msra.mxu0 %v1780
        %2235 = vmatprep.subr.bf16.mxu0 0
        %2236 = vmatpush2.bf16.msra.mxu0 %v1779
        %2237 = vmatprep.mubr.bf16.mxu0 %v1383
        %2238 = vmatmul.mubr.bf16.gmra.mxu0 %v1160
        %v2239 = vpop.f32.mrf.mxu0
        %v2240 = vadd.f32 %v2079, %v2239
        %v2241 = vpop.f32.mrf.mxu0
        %v2242 = vpop.f32.mrf.mxu0
        %v2243 = vadd.f32 %v2082, %v2242
        %v2244 = vpop.f32.mrf.mxu0
        %2245 = vmatprep.mubr.bf16.mxu0 %v1386
        %2246 = vmatmul.mubr.bf16.gmra.mxu0 %v1172
        %v2247 = vpop.f32.mrf.mxu0
        %v2248 = vadd.f32 %v2087, %v2247
        %v2249 = vpop.f32.mrf.mxu0
        %v2250 = vpop.f32.mrf.mxu0
        %v2251 = vadd.f32 %v2090, %v2250
        %v2252 = vpop.f32.mrf.mxu0
        %2253 = vmatprep.mubr.bf16.mxu0 %v1389
        %2254 = vmatmul.mubr.bf16.gmra.mxu0 %v1184
        %v2255 = vpop.f32.mrf.mxu0
        %v2256 = vadd.f32 %v2095, %v2255
        %v2257 = vpop.f32.mrf.mxu0
        %v2258 = vpop.f32.mrf.mxu0
        %v2259 = vadd.f32 %v2098, %v2258
        %v2260 = vpop.f32.mrf.mxu0
        %2261 = vmatprep.mubr.bf16.mxu0 %v1392
        %2262 = vmatmul.mubr.bf16.gmra.mxu0 %v1196
        %v2263 = vpop.f32.mrf.mxu0
        %v2264 = vadd.f32 %v2103, %v2263
        %v2265 = vpop.f32.mrf.mxu0
        %v2266 = vpop.f32.mrf.mxu0
        %v2267 = vadd.f32 %v2106, %v2266
        %v2268 = vpop.f32.mrf.mxu0
        %2269 = vmatprep.mubr.bf16.mxu0 %v1395
        %2270 = vmatmul.mubr.bf16.gmra.mxu0 %v1208
        %v2271 = vpop.f32.mrf.mxu0
        %v2272 = vadd.f32 %v2111, %v2271
        %v2273 = vpop.f32.mrf.mxu0
        %v2274 = vpop.f32.mrf.mxu0
        %v2275 = vadd.f32 %v2114, %v2274
        %v2276 = vpop.f32.mrf.mxu0
        %2277 = vmatprep.mubr.bf16.mxu0 %v1398
        %2278 = vmatmul.mubr.bf16.gmra.mxu0 %v1220
        %v2279 = vpop.f32.mrf.mxu0
        %v2280 = vadd.f32 %v2119, %v2279
        %v2281 = vpop.f32.mrf.mxu0
        %v2282 = vpop.f32.mrf.mxu0
        %v2283 = vadd.f32 %v2122, %v2282
        %v2284 = vpop.f32.mrf.mxu0
        %2285 = vmatprep.mubr.bf16.mxu0 %v1401
        %2286 = vmatmul.mubr.bf16.gmra.mxu0 %v1232
        %v2287 = vpop.f32.mrf.mxu0
        %v2288 = vadd.f32 %v2127, %v2287
        %v2289 = vpop.f32.mrf.mxu0
        %v2290 = vpop.f32.mrf.mxu0
        %v2291 = vadd.f32 %v2130, %v2290
        %v2292 = vpop.f32.mrf.mxu0
        %2293 = vmatprep.mubr.bf16.mxu0 %v1404
        %2294 = vmatmul.mubr.bf16.gmra.mxu0 %v1244
        %v2295 = vpop.f32.mrf.mxu0
        %v2296 = vadd.f32 %v2135, %v2295
        %v2297 = vpop.f32.mrf.mxu0
        %v2298 = vpop.f32.mrf.mxu0
        %v2299 = vadd.f32 %v2138, %v2298
        %v2300 = vpop.f32.mrf.mxu0
        %2301 = vmatprep.mubr.bf16.mxu0 %v1407
        %2302 = vmatmul.mubr.bf16.gmra.mxu0 %v1256
        %v2303 = vpop.f32.mrf.mxu0
        %v2304 = vadd.f32 %v2143, %v2303
        %v2305 = vpop.f32.mrf.mxu0
        %v2306 = vpop.f32.mrf.mxu0
        %v2307 = vadd.f32 %v2146, %v2306
        %v2308 = vpop.f32.mrf.mxu0
        %2309 = vmatprep.mubr.bf16.mxu0 %v1410
        %2310 = vmatmul.mubr.bf16.gmra.mxu0 %v1268
        %v2311 = vpop.f32.mrf.mxu0
        %v2312 = vadd.f32 %v2151, %v2311
        %v2313 = vpop.f32.mrf.mxu0
        %v2314 = vpop.f32.mrf.mxu0
        %v2315 = vadd.f32 %v2154, %v2314
        %v2316 = vpop.f32.mrf.mxu0
        %2317 = vmatprep.mubr.bf16.mxu0 %v1413
        %2318 = vmatmul.mubr.bf16.gmra.mxu0 %v1280
        %v2319 = vpop.f32.mrf.mxu0
        %v2320 = vadd.f32 %v2159, %v2319
        %v2321 = vpop.f32.mrf.mxu0
        %v2322 = vpop.f32.mrf.mxu0
        %v2323 = vadd.f32 %v2162, %v2322
        %v2324 = vpop.f32.mrf.mxu0
        %2325 = vmatprep.mubr.bf16.mxu0 %v1416
        %2326 = vmatmul.mubr.bf16.gmra.mxu0 %v1292
        %v2327 = vpop.f32.mrf.mxu0
        %v2328 = vadd.f32 %v2167, %v2327
        %v2329 = vpop.f32.mrf.mxu0
        %v2330 = vpop.f32.mrf.mxu0
        %v2331 = vadd.f32 %v2170, %v2330
        %v2332 = vpop.f32.mrf.mxu0
        %2333 = vmatprep.mubr.bf16.mxu0 %v1419
        %2334 = vmatmul.mubr.bf16.gmra.mxu0 %v1304
        %v2335 = vpop.f32.mrf.mxu0
        %v2336 = vadd.f32 %v2175, %v2335
        %v2337 = vpop.f32.mrf.mxu0
        %v2338 = vpop.f32.mrf.mxu0
        %v2339 = vadd.f32 %v2178, %v2338
        %v2340 = vpop.f32.mrf.mxu0
        %2341 = vmatprep.mubr.bf16.mxu0 %v1422
        %2342 = vmatmul.mubr.bf16.gmra.mxu0 %v1316
        %v2343 = vpop.f32.mrf.mxu0
        %v2344 = vadd.f32 %v2183, %v2343
        %v2345 = vpop.f32.mrf.mxu0
        %v2346 = vpop.f32.mrf.mxu0
        %v2347 = vadd.f32 %v2186, %v2346
        %v2348 = vpop.f32.mrf.mxu0
        %2349 = vmatprep.mubr.bf16.mxu0 %v1425
        %2350 = vmatmul.mubr.bf16.gmra.mxu0 %v1328
        %v2351 = vpop.f32.mrf.mxu0
        %v2352 = vadd.f32 %v2191, %v2351
        %v2353 = vpop.f32.mrf.mxu0
        %v2354 = vpop.f32.mrf.mxu0
        %v2355 = vadd.f32 %v2194, %v2354
        %v2356 = vpop.f32.mrf.mxu0
        %2357 = vmatprep.mubr.bf16.mxu0 %v1380
        %2358 = vmatmul.mubr.bf16.gmra.mxu0 %v1148
        %v2359 = vpop.f32.mrf.mxu0
        %v2360 = vadd.f32 %v2199, %v2359
        %v2361 = vpop.f32.mrf.mxu0
        %v2362 = vpop.f32.mrf.mxu0
        %v2363 = vadd.f32 %v2202, %v2362
        %v2364 = vpop.f32.mrf.mxu0
        %2365 = vdwg.mxu0
        %2366 = vmatprep.subr.bf16.mxu0 0
        %2367 = vmatpush1.bf16.msra.mxu0 %v1794
        %2368 = vmatprep.subr.bf16.mxu0 0
        %2369 = vmatpush1.bf16.msra.mxu0 %v1793
        %2370 = vmatprep.subr.bf16.mxu0 0
        %2371 = vmatpush1.bf16.msra.mxu0 %v1792
        %2372 = vmatprep.subr.bf16.mxu0 0
        %2373 = vmatpush1.bf16.msra.mxu0 %v1791
        %2374 = vmatprep.subr.bf16.mxu0 0
        %2375 = vmatpush1.bf16.msra.mxu0 %v1790
        %2376 = vmatprep.subr.bf16.mxu0 0
        %2377 = vmatpush1.bf16.msra.mxu0 %v1789
        %2378 = vmatprep.subr.bf16.mxu0 0
        %2379 = vmatpush1.bf16.msra.mxu0 %v1788
        %2380 = vmatprep.subr.bf16.mxu0 0
        %2381 = vmatpush1.bf16.msra.mxu0 %v1787
        %2382 = vmatprep.subr.bf16.mxu0 0
        %2383 = vmatpush2.bf16.msra.mxu0 %v1802
        %2384 = vmatprep.subr.bf16.mxu0 0
        %2385 = vmatpush2.bf16.msra.mxu0 %v1801
        %2386 = vmatprep.subr.bf16.mxu0 0
        %2387 = vmatpush2.bf16.msra.mxu0 %v1800
        %2388 = vmatprep.subr.bf16.mxu0 0
        %2389 = vmatpush2.bf16.msra.mxu0 %v1799
        %2390 = vmatprep.subr.bf16.mxu0 0
        %2391 = vmatpush2.bf16.msra.mxu0 %v1798
        %2392 = vmatprep.subr.bf16.mxu0 0
        %2393 = vmatpush2.bf16.msra.mxu0 %v1797
        %2394 = vmatprep.subr.bf16.mxu0 0
        %2395 = vmatpush2.bf16.msra.mxu0 %v1796
        %2396 = vmatprep.subr.bf16.mxu0 0
        %2397 = vmatpush2.bf16.msra.mxu0 %v1795
        %2398 = vmatprep.mubr.bf16.mxu0 %v1172
        %2399 = vmatmul.mubr.bf16.gmra.mxu0 %v958
        %v2400 = vpop.f32.mrf.mxu0
        %v2401 = vadd.f32 %v2240, %v2400
        %v2402 = vpop.f32.mrf.mxu0
        %v2403 = vpop.f32.mrf.mxu0
        %v2404 = vadd.f32 %v2243, %v2403
        %v2405 = vpop.f32.mrf.mxu0
        %2406 = vmatprep.mubr.bf16.mxu0 %v1184
        %2407 = vmatmul.mubr.bf16.gmra.mxu0 %v959
        %v2408 = vpop.f32.mrf.mxu0
        %v2409 = vadd.f32 %v2248, %v2408
        %v2410 = vpop.f32.mrf.mxu0
        %v2411 = vpop.f32.mrf.mxu0
        %v2412 = vadd.f32 %v2251, %v2411
        %v2413 = vpop.f32.mrf.mxu0
        %2414 = vmatprep.mubr.bf16.mxu0 %v1196
        %2415 = vmatmul.mubr.bf16.gmra.mxu0 %v960
        %v2416 = vpop.f32.mrf.mxu0
        %v2417 = vadd.f32 %v2256, %v2416
        %v2418 = vpop.f32.mrf.mxu0
        %v2419 = vpop.f32.mrf.mxu0
        %v2420 = vadd.f32 %v2259, %v2419
        %v2421 = vpop.f32.mrf.mxu0
        %2422 = vmatprep.mubr.bf16.mxu0 %v1208
        %2423 = vmatmul.mubr.bf16.gmra.mxu0 %v961
        %v2424 = vpop.f32.mrf.mxu0
        %v2425 = vadd.f32 %v2264, %v2424
        %v2426 = vpop.f32.mrf.mxu0
        %v2427 = vpop.f32.mrf.mxu0
        %v2428 = vadd.f32 %v2267, %v2427
        %v2429 = vpop.f32.mrf.mxu0
        %2430 = vmatprep.mubr.bf16.mxu0 %v1220
        %2431 = vmatmul.mubr.bf16.gmra.mxu0 %v962
        %v2432 = vpop.f32.mrf.mxu0
        %v2433 = vadd.f32 %v2272, %v2432
        %v2434 = vpop.f32.mrf.mxu0
        %v2435 = vpop.f32.mrf.mxu0
        %v2436 = vadd.f32 %v2275, %v2435
        %v2437 = vpop.f32.mrf.mxu0
        %2438 = vmatprep.mubr.bf16.mxu0 %v1232
        %2439 = vmatmul.mubr.bf16.gmra.mxu0 %v963
        %v2440 = vpop.f32.mrf.mxu0
        %v2441 = vadd.f32 %v2280, %v2440
        %v2442 = vpop.f32.mrf.mxu0
        %v2443 = vpop.f32.mrf.mxu0
        %v2444 = vadd.f32 %v2283, %v2443
        %v2445 = vpop.f32.mrf.mxu0
        %2446 = vmatprep.mubr.bf16.mxu0 %v1244
        %2447 = vmatmul.mubr.bf16.gmra.mxu0 %v964
        %v2448 = vpop.f32.mrf.mxu0
        %v2449 = vadd.f32 %v2288, %v2448
        %v2450 = vpop.f32.mrf.mxu0
        %v2451 = vpop.f32.mrf.mxu0
        %v2452 = vadd.f32 %v2291, %v2451
        %v2453 = vpop.f32.mrf.mxu0
        %2454 = vmatprep.mubr.bf16.mxu0 %v1256
        %2455 = vmatmul.mubr.bf16.gmra.mxu0 %v965
        %v2456 = vpop.f32.mrf.mxu0
        %v2457 = vadd.f32 %v2296, %v2456
        %v2458 = vpop.f32.mrf.mxu0
        %v2459 = vpop.f32.mrf.mxu0
        %v2460 = vadd.f32 %v2299, %v2459
        %v2461 = vpop.f32.mrf.mxu0
        %2462 = vmatprep.mubr.bf16.mxu0 %v1268
        %2463 = vmatmul.mubr.bf16.gmra.mxu0 %v966
        %v2464 = vpop.f32.mrf.mxu0
        %v2465 = vadd.f32 %v2304, %v2464
        %v2466 = vpop.f32.mrf.mxu0
        %v2467 = vpop.f32.mrf.mxu0
        %v2468 = vadd.f32 %v2307, %v2467
        %v2469 = vpop.f32.mrf.mxu0
        %2470 = vmatprep.mubr.bf16.mxu0 %v1280
        %2471 = vmatmul.mubr.bf16.gmra.mxu0 %v967
        %v2472 = vpop.f32.mrf.mxu0
        %v2473 = vadd.f32 %v2312, %v2472
        %v2474 = vpop.f32.mrf.mxu0
        %v2475 = vpop.f32.mrf.mxu0
        %v2476 = vadd.f32 %v2315, %v2475
        %v2477 = vpop.f32.mrf.mxu0
        %2478 = vmatprep.mubr.bf16.mxu0 %v1292
        %2479 = vmatmul.mubr.bf16.gmra.mxu0 %v968
        %v2480 = vpop.f32.mrf.mxu0
        %v2481 = vadd.f32 %v2320, %v2480
        %v2482 = vpop.f32.mrf.mxu0
        %v2483 = vpop.f32.mrf.mxu0
        %v2484 = vadd.f32 %v2323, %v2483
        %v2485 = vpop.f32.mrf.mxu0
        %2486 = vmatprep.mubr.bf16.mxu0 %v1304
        %2487 = vmatmul.mubr.bf16.gmra.mxu0 %v969
        %v2488 = vpop.f32.mrf.mxu0
        %v2489 = vadd.f32 %v2328, %v2488
        %v2490 = vpop.f32.mrf.mxu0
        %v2491 = vpop.f32.mrf.mxu0
        %v2492 = vadd.f32 %v2331, %v2491
        %v2493 = vpop.f32.mrf.mxu0
        %2494 = vmatprep.mubr.bf16.mxu0 %v1316
        %2495 = vmatmul.mubr.bf16.gmra.mxu0 %v970
        %v2496 = vpop.f32.mrf.mxu0
        %v2497 = vadd.f32 %v2336, %v2496
        %v2498 = vpop.f32.mrf.mxu0
        %v2499 = vpop.f32.mrf.mxu0
        %v2500 = vadd.f32 %v2339, %v2499
        %v2501 = vpop.f32.mrf.mxu0
        %2502 = vmatprep.mubr.bf16.mxu0 %v1328
        %2503 = vmatmul.mubr.bf16.gmra.mxu0 %v971
        %v2504 = vpop.f32.mrf.mxu0
        %v2505 = vadd.f32 %v2344, %v2504
        %v2506 = vpop.f32.mrf.mxu0
        %v2507 = vpop.f32.mrf.mxu0
        %v2508 = vadd.f32 %v2347, %v2507
        %v2509 = vpop.f32.mrf.mxu0
        %2510 = vmatprep.mubr.bf16.mxu0 %v1148
        %2511 = vmatmul.mubr.bf16.gmra.mxu0 %v972
        %v2512 = vpop.f32.mrf.mxu0
        %v2513 = vadd.f32 %v2352, %v2512
        %v2514 = vpop.f32.mrf.mxu0
        %v2515 = vpop.f32.mrf.mxu0
        %v2516 = vadd.f32 %v2355, %v2515
        %v2517 = vpop.f32.mrf.mxu0
        %2518 = vmatprep.mubr.bf16.mxu0 %v1160
        %2519 = vmatmul.mubr.bf16.gmra.mxu0 %v957
        %v2520 = vpop.f32.mrf.mxu0
        %v2521 = vadd.f32 %v2360, %v2520
        %v2522 = vpop.f32.mrf.mxu0
        %v2523 = vpop.f32.mrf.mxu0
        %v2524 = vadd.f32 %v2363, %v2523
        %v2525 = vpop.f32.mrf.mxu0
        %2526 = vdwg.mxu0
        %2527 = vmatprep.subr.bf16.mxu0 0
        %2528 = vmatpush1.bf16.msra.mxu0 %v1810
        %2529 = vmatprep.subr.bf16.mxu0 0
        %2530 = vmatpush1.bf16.msra.mxu0 %v1809
        %2531 = vmatprep.subr.bf16.mxu0 0
        %2532 = vmatpush1.bf16.msra.mxu0 %v1808
        %2533 = vmatprep.subr.bf16.mxu0 0
        %2534 = vmatpush1.bf16.msra.mxu0 %v1807
        %2535 = vmatprep.subr.bf16.mxu0 0
        %2536 = vmatpush1.bf16.msra.mxu0 %v1806
        %2537 = vmatprep.subr.bf16.mxu0 0
        %2538 = vmatpush1.bf16.msra.mxu0 %v1805
        %2539 = vmatprep.subr.bf16.mxu0 0
        %2540 = vmatpush1.bf16.msra.mxu0 %v1804
        %2541 = vmatprep.subr.bf16.mxu0 0
        %2542 = vmatpush1.bf16.msra.mxu0 %v1803
        %2543 = vmatprep.subr.bf16.mxu0 0
        %2544 = vmatpush2.bf16.msra.mxu0 0
        %2545 = vmatprep.subr.bf16.mxu0 0
        %2546 = vmatpush2.bf16.msra.mxu0 0
        %2547 = vmatprep.subr.bf16.mxu0 0
        %2548 = vmatpush2.bf16.msra.mxu0 0
        %2549 = vmatprep.subr.bf16.mxu0 0
        %2550 = vmatpush2.bf16.msra.mxu0 0
        %2551 = vmatprep.subr.bf16.mxu0 0
        %2552 = vmatpush2.bf16.msra.mxu0 0
        %2553 = vmatprep.subr.bf16.mxu0 0
        %2554 = vmatpush2.bf16.msra.mxu0 0
        %2555 = vmatprep.subr.bf16.mxu0 0
        %2556 = vmatpush2.bf16.msra.mxu0 0
        %2557 = vmatprep.subr.bf16.mxu0 0
        %2558 = vmatpush2.bf16.msra.mxu0 0
        %2559 = vmatprep.mubr.bf16.mxu0 0
        %2560 = vmatmul.mubr.bf16.gmra.mxu0 %v1386
        %v2561 = vpop.f32.mrf.mxu0
        %v2562 = vadd.f32 %v2401, %v2561
        %v2563 = vpop.f32.mrf.mxu0
        %v2564 = vpop.f32.mrf.mxu0
        %v2565 = vadd.f32 %v2404, %v2564
        %v2566 = vpop.f32.mrf.mxu0
        %2567 = vmatprep.mubr.bf16.mxu0 0
        %2568 = vmatmul.mubr.bf16.gmra.mxu0 %v1389
        %v2569 = vpop.f32.mrf.mxu0
        %v2570 = vadd.f32 %v2409, %v2569
        %v2571 = vpop.f32.mrf.mxu0
        %v2572 = vpop.f32.mrf.mxu0
        %v2573 = vadd.f32 %v2412, %v2572
        %v2574 = vpop.f32.mrf.mxu0
        %2575 = vmatprep.mubr.bf16.mxu0 0
        %2576 = vmatmul.mubr.bf16.gmra.mxu0 %v1392
        %v2577 = vpop.f32.mrf.mxu0
        %v2578 = vadd.f32 %v2417, %v2577
        %v2579 = vpop.f32.mrf.mxu0
        %v2580 = vpop.f32.mrf.mxu0
        %v2581 = vadd.f32 %v2420, %v2580
        %v2582 = vpop.f32.mrf.mxu0
        %2583 = vmatprep.mubr.bf16.mxu0 0
        %2584 = vmatmul.mubr.bf16.gmra.mxu0 %v1395
        %v2585 = vpop.f32.mrf.mxu0
        %v2586 = vadd.f32 %v2425, %v2585
        %v2587 = vpop.f32.mrf.mxu0
        %v2588 = vpop.f32.mrf.mxu0
        %v2589 = vadd.f32 %v2428, %v2588
        %v2590 = vpop.f32.mrf.mxu0
        %2591 = vmatprep.mubr.bf16.mxu0 0
        %2592 = vmatmul.mubr.bf16.gmra.mxu0 %v1398
        %v2593 = vpop.f32.mrf.mxu0
        %v2594 = vadd.f32 %v2433, %v2593
        %v2595 = vpop.f32.mrf.mxu0
        %v2596 = vpop.f32.mrf.mxu0
        %v2597 = vadd.f32 %v2436, %v2596
        %v2598 = vpop.f32.mrf.mxu0
        %2599 = vmatprep.mubr.bf16.mxu0 0
        %2600 = vmatmul.mubr.bf16.gmra.mxu0 %v1401
        %v2601 = vpop.f32.mrf.mxu0
        %v2602 = vadd.f32 %v2441, %v2601
        %v2603 = vpop.f32.mrf.mxu0
        %v2604 = vpop.f32.mrf.mxu0
        %v2605 = vadd.f32 %v2444, %v2604
        %v2606 = vpop.f32.mrf.mxu0
        %2607 = vmatprep.mubr.bf16.mxu0 0
        %2608 = vmatmul.mubr.bf16.gmra.mxu0 %v1404
        %v2609 = vpop.f32.mrf.mxu0
        %v2610 = vadd.f32 %v2449, %v2609
        %v2611 = vpop.f32.mrf.mxu0
        %v2612 = vpop.f32.mrf.mxu0
        %v2613 = vadd.f32 %v2452, %v2612
        %v2614 = vpop.f32.mrf.mxu0
        %2615 = vmatprep.mubr.bf16.mxu0 0
        %2616 = vmatmul.mubr.bf16.gmra.mxu0 %v1407
        %v2617 = vpop.f32.mrf.mxu0
        %v2618 = vadd.f32 %v2457, %v2617
        %v2619 = vpop.f32.mrf.mxu0
        %v2620 = vpop.f32.mrf.mxu0
        %v2621 = vadd.f32 %v2460, %v2620
        %v2622 = vpop.f32.mrf.mxu0
        %2623 = vmatprep.mubr.bf16.mxu0 0
        %2624 = vmatmul.mubr.bf16.gmra.mxu0 %v1410
        %v2625 = vpop.f32.mrf.mxu0
        %v2626 = vadd.f32 %v2465, %v2625
        %v2627 = vpop.f32.mrf.mxu0
        %v2628 = vpop.f32.mrf.mxu0
        %v2629 = vadd.f32 %v2468, %v2628
        %v2630 = vpop.f32.mrf.mxu0
        %2631 = vmatprep.mubr.bf16.mxu0 0
        %2632 = vmatmul.mubr.bf16.gmra.mxu0 %v1413
        %v2633 = vpop.f32.mrf.mxu0
        %v2634 = vadd.f32 %v2473, %v2633
        %v2635 = vpop.f32.mrf.mxu0
        %v2636 = vpop.f32.mrf.mxu0
        %v2637 = vadd.f32 %v2476, %v2636
        %v2638 = vpop.f32.mrf.mxu0
        %2639 = vmatprep.mubr.bf16.mxu0 0
        %2640 = vmatmul.mubr.bf16.gmra.mxu0 %v1416
        %v2641 = vpop.f32.mrf.mxu0
        %v2642 = vadd.f32 %v2481, %v2641
        %v2643 = vpop.f32.mrf.mxu0
        %v2644 = vpop.f32.mrf.mxu0
        %v2645 = vadd.f32 %v2484, %v2644
        %v2646 = vpop.f32.mrf.mxu0
        %2647 = vmatprep.mubr.bf16.mxu0 0
        %2648 = vmatmul.mubr.bf16.gmra.mxu0 %v1419
        %v2649 = vpop.f32.mrf.mxu0
        %v2650 = vadd.f32 %v2489, %v2649
        %v2651 = vpop.f32.mrf.mxu0
        %v2652 = vpop.f32.mrf.mxu0
        %v2653 = vadd.f32 %v2492, %v2652
        %v2654 = vpop.f32.mrf.mxu0
        %2655 = vmatprep.mubr.bf16.mxu0 0
        %2656 = vmatmul.mubr.bf16.gmra.mxu0 %v1422
        %v2657 = vpop.f32.mrf.mxu0
        %v2658 = vadd.f32 %v2497, %v2657
        %v2659 = vpop.f32.mrf.mxu0
        %v2660 = vpop.f32.mrf.mxu0
        %v2661 = vadd.f32 %v2500, %v2660
        %v2662 = vpop.f32.mrf.mxu0
        %2663 = vmatprep.mubr.bf16.mxu0 0
        %2664 = vmatmul.mubr.bf16.gmra.mxu0 %v1425
        %v2665 = vpop.f32.mrf.mxu0
        %v2666 = vadd.f32 %v2505, %v2665
        %v2667 = vpop.f32.mrf.mxu0
        %v2668 = vpop.f32.mrf.mxu0
        %v2669 = vadd.f32 %v2508, %v2668
        %v2670 = vpop.f32.mrf.mxu0
        %2671 = vmatprep.mubr.bf16.mxu0 0
        %2672 = vmatmul.mubr.bf16.gmra.mxu0 %v1380
        %v2673 = vpop.f32.mrf.mxu0
        %v2674 = vadd.f32 %v2513, %v2673
        %v2675 = vpop.f32.mrf.mxu0
        %v2676 = vpop.f32.mrf.mxu0
        %v2677 = vadd.f32 %v2516, %v2676
        %v2678 = vpop.f32.mrf.mxu0
        %2679 = vmatprep.mubr.bf16.mxu0 0
        %2680 = vmatmul.mubr.bf16.gmra.mxu0 %v1383
        %v2681 = vpop.f32.mrf.mxu0
        %v2682 = vadd.f32 %v2521, %v2681
        %v2683 = vpop.f32.mrf.mxu0
        %v2684 = vpop.f32.mrf.mxu0
        %v2685 = vadd.f32 %v2524, %v2684
        %v2686 = vpop.f32.mrf.mxu0
        %2687 = vdwg.mxu0
        %v2688 = vadd.f32 %v2562, %v746
        %v2689 = vadd.f32 %v2565, %v747
        %v2690 = vadd.f32 %v2570, %v748
        %v2691 = vadd.f32 %v2573, %v749
        %v2692 = vadd.f32 %v2578, %v750
        %v2693 = vadd.f32 %v2581, %v751
        %v2694 = vadd.f32 %v2586, %v752
        %v2695 = vadd.f32 %v2589, %v753
        %v2696 = vadd.f32 %v2594, %v754
        %v2697 = vadd.f32 %v2597, %v755
        %v2698 = vadd.f32 %v2602, %v756
        %v2699 = vadd.f32 %v2605, %v757
        %v2700 = vadd.f32 %v2610, %v758
        %v2701 = vadd.f32 %v2613, %v759
        %v2702 = vadd.f32 %v2618, %v760
        %v2703 = vadd.f32 %v2621, %v761
        %v2704 = vadd.f32 %v2626, %v762
        %v2705 = vadd.f32 %v2629, %v763
        %v2706 = vadd.f32 %v2634, %v764
        %v2707 = vadd.f32 %v2637, %v765
        %v2708 = vadd.f32 %v2642, %v766
        %v2709 = vadd.f32 %v2645, %v767
        %v2710 = vadd.f32 %v2650, %v768
        %v2711 = vadd.f32 %v2653, %v769
        %v2712 = vadd.f32 %v2658, %v770
        %v2713 = vadd.f32 %v2661, %v771
        %v2714 = vadd.f32 %v2666, %v772
        %v2715 = vadd.f32 %v2669, %v773
        %v2716 = vadd.f32 %v2674, %v774
        %v2717 = vadd.f32 %v2677, %v775
        %v2718 = vadd.f32 %v2682, %v776
        %v2719 = vadd.f32 %v2685, %v777
        %v2720 = vmax.f32 %v2688, 0.0
        %v2721 = vmax.f32 %v2689, 0.0
        %v2722 = vmax.f32 %v2690, 0.0
        %v2723 = vmax.f32 %v2691, 0.0
        %v2724 = vmax.f32 %v2692, 0.0
        %v2725 = vmax.f32 %v2693, 0.0
        %v2726 = vmax.f32 %v2694, 0.0
        %v2727 = vmax.f32 %v2695, 0.0
        %v2728 = vmax.f32 %v2696, 0.0
        %v2729 = vmax.f32 %v2697, 0.0
        %v2730 = vmax.f32 %v2698, 0.0
        %v2731 = vmax.f32 %v2699, 0.0
        %v2732 = vmax.f32 %v2700, 0.0
        %v2733 = vmax.f32 %v2701, 0.0
        %v2734 = vmax.f32 %v2702, 0.0
        %v2735 = vmax.f32 %v2703, 0.0
        %v2736 = vmax.f32 %v2704, 0.0
        %v2737 = vmax.f32 %v2705, 0.0
        %v2738 = vmax.f32 %v2706, 0.0
        %v2739 = vmax.f32 %v2707, 0.0
        %v2740 = vmax.f32 %v2708, 0.0
        %v2741 = vmax.f32 %v2709, 0.0
        %v2742 = vmax.f32 %v2710, 0.0
        %v2743 = vmax.f32 %v2711, 0.0
        %v2744 = vmax.f32 %v2712, 0.0
        %v2745 = vmax.f32 %v2713, 0.0
        %v2746 = vmax.f32 %v2714, 0.0
        %v2747 = vmax.f32 %v2715, 0.0
        %v2748 = vmax.f32 %v2716, 0.0
        %v2749 = vmax.f32 %v2717, 0.0
        %v2750 = vmax.f32 %v2718, 0.0
        %v2751 = vmax.f32 %v2719, 0.0
        %2752 = vst [vmem:[#allocation2] sm:$0xff] %v2720
        %2753 = vst [vmem:[#allocation2 + $0x8] sm:$0xff] %v2721
        %2754 = vst [vmem:[#allocation2 + $0x10] sm:$0xff] %v2722
        %2755 = vst [vmem:[#allocation2 + $0x18] sm:$0xff] %v2723
        %2756 = vst [vmem:[#allocation2 + $0x20] sm:$0xff] %v2724
        %2757 = vst [vmem:[#allocation2 + $0x28] sm:$0xff] %v2725
        %2758 = vst [vmem:[#allocation2 + $0x30] sm:$0xff] %v2726
        %2759 = vst [vmem:[#allocation2 + $0x38] sm:$0xff] %v2727
        %2760 = vst [vmem:[#allocation2 + $0x40] sm:$0xff] %v2728
        %2761 = vst [vmem:[#allocation2 + $0x48] sm:$0xff] %v2729
        %2762 = vst [vmem:[#allocation2 + $0x50] sm:$0xff] %v2730
        %2763 = vst [vmem:[#allocation2 + $0x58] sm:$0xff] %v2731
        %2764 = vst [vmem:[#allocation2 + $0x60] sm:$0xff] %v2732
        %2765 = vst [vmem:[#allocation2 + $0x68] sm:$0xff] %v2733
        %2766 = vst [vmem:[#allocation2 + $0x70] sm:$0xff] %v2734
        %2767 = vst [vmem:[#allocation2 + $0x78] sm:$0xff] %v2735
        %2768 = vst [vmem:[#allocation2 + $0x80] sm:$0xff] %v2736
        %2769 = vst [vmem:[#allocation2 + $0x88] sm:$0xff] %v2737
        %2770 = vst [vmem:[#allocation2 + $0x90] sm:$0xff] %v2738
        %2771 = vst [vmem:[#allocation2 + $0x98] sm:$0xff] %v2739
        %2772 = vst [vmem:[#allocation2 + $0xa0] sm:$0xff] %v2740
        %2773 = vst [vmem:[#allocation2 + $0xa8] sm:$0xff] %v2741
        %2774 = vst [vmem:[#allocation2 + $0xb0] sm:$0xff] %v2742
        %2775 = vst [vmem:[#allocation2 + $0xb8] sm:$0xff] %v2743
        %2776 = vst [vmem:[#allocation2 + $0xc0] sm:$0xff] %v2744
        %2777 = vst [vmem:[#allocation2 + $0xc8] sm:$0xff] %v2745
        %2778 = vst [vmem:[#allocation2 + $0xd0] sm:$0xff] %v2746
        %2779 = vst [vmem:[#allocation2 + $0xd8] sm:$0xff] %v2747
        %2780 = vst [vmem:[#allocation2 + $0xe0] sm:$0xff] %v2748
        %2781 = vst [vmem:[#allocation2 + $0xe8] sm:$0xff] %v2749
        %2782 = vst [vmem:[#allocation2 + $0xf0] sm:$0xff] %v2750
        %2783 = vst [vmem:[#allocation2 + $0xf8] sm:$0xff] %v2751
      $region53: #{_forward_jit.1} parent=47 // loop_footer
        %s745 = sadd.s32 1, %s741
      $region54: #{_forward_jit.1} parent=47 // loop_footer_branch
        %740 = sbr.rel target = $region50
      $region55: #{_forward_jit.1} parent=47 // loop_exit
        _
      %v2784 = vld [vmem:[#allocation2] sm:$0xff]
      %v2785 = vld [vmem:[#allocation2 + $0x8] sm:$0xff]
      %v2786 = vld [vmem:[#allocation2 + $0x10] sm:$0xff]
      %v2787 = vld [vmem:[#allocation2 + $0x18] sm:$0xff]
      %v2788 = vld [vmem:[#allocation2 + $0x20] sm:$0xff]
      %v2789 = vld [vmem:[#allocation2 + $0x28] sm:$0xff]
      %v2790 = vld [vmem:[#allocation2 + $0x30] sm:$0xff]
      %v2791 = vld [vmem:[#allocation2 + $0x38] sm:$0xff]
      %v2792 = vld [vmem:[#allocation2 + $0x40] sm:$0xff]
      %v2793 = vld [vmem:[#allocation2 + $0x48] sm:$0xff]
      %v2794 = vld [vmem:[#allocation2 + $0x50] sm:$0xff]
      %v2795 = vld [vmem:[#allocation2 + $0x58] sm:$0xff]
      %v2796 = vld [vmem:[#allocation2 + $0x60] sm:$0xff]
      %v2797 = vld [vmem:[#allocation2 + $0x68] sm:$0xff]
      %v2798 = vld [vmem:[#allocation2 + $0x70] sm:$0xff]
      %v2799 = vld [vmem:[#allocation2 + $0x78] sm:$0xff]
      %v2800 = vld [vmem:[#allocation2 + $0x80] sm:$0xff]
      %v2801 = vld [vmem:[#allocation2 + $0x88] sm:$0xff]
      %v2802 = vld [vmem:[#allocation2 + $0x90] sm:$0xff]
      %v2803 = vld [vmem:[#allocation2 + $0x98] sm:$0xff]
      %v2804 = vld [vmem:[#allocation2 + $0xa0] sm:$0xff]
      %v2805 = vld [vmem:[#allocation2 + $0xa8] sm:$0xff]
      %v2806 = vld [vmem:[#allocation2 + $0xb0] sm:$0xff]
      %v2807 = vld [vmem:[#allocation2 + $0xb8] sm:$0xff]
      %v2808 = vld [vmem:[#allocation2 + $0xc0] sm:$0xff]
      %v2809 = vld [vmem:[#allocation2 + $0xc8] sm:$0xff]
      %v2810 = vld [vmem:[#allocation2 + $0xd0] sm:$0xff]
      %v2811 = vld [vmem:[#allocation2 + $0xd8] sm:$0xff]
      %v2812 = vld [vmem:[#allocation2 + $0xe0] sm:$0xff]
      %v2813 = vld [vmem:[#allocation2 + $0xe8] sm:$0xff]
      %v2814 = vld [vmem:[#allocation2 + $0xf0] sm:$0xff]
      %v2815 = vld [vmem:[#allocation2 + $0xf8] sm:$0xff]
      %v2816 = vadd.f32 %v2784, %v2785
      %v2817 = vadd.f32 %v2816, %v2786
      %v2818 = vadd.f32 %v2817, %v2787
      %v2819 = vadd.f32 %v2818, %v2788
      %v2820 = vadd.f32 %v2819, %v2789
      %v2821 = vadd.f32 %v2820, %v2790
      %v2822 = vadd.f32 %v2821, %v2791
      %v2823 = vadd.f32 %v2822, %v2792
      %v2824 = vadd.f32 %v2823, %v2793
      %v2825 = vadd.f32 %v2824, %v2794
      %v2826 = vadd.f32 %v2825, %v2795
      %v2827 = vadd.f32 %v2826, %v2796
      %v2828 = vadd.f32 %v2827, %v2797
      %v2829 = vadd.f32 %v2828, %v2798
      %v2830 = vadd.f32 %v2829, %v2799
      %v2831 = vadd.f32 %v2830, %v2800
      %v2832 = vadd.f32 %v2831, %v2801
      %v2833 = vadd.f32 %v2832, %v2802
      %v2834 = vadd.f32 %v2833, %v2803
      %v2835 = vadd.f32 %v2834, %v2804
      %v2836 = vadd.f32 %v2835, %v2805
      %v2837 = vadd.f32 %v2836, %v2806
      %v2838 = vadd.f32 %v2837, %v2807
      %v2839 = vadd.f32 %v2838, %v2808
      %v2840 = vadd.f32 %v2839, %v2809
      %v2841 = vadd.f32 %v2840, %v2810
      %v2842 = vadd.f32 %v2841, %v2811
      %v2843 = vadd.f32 %v2842, %v2812
      %v2844 = vadd.f32 %v2843, %v2813
      %v2845 = vadd.f32 %v2844, %v2814
      %v2846 = vadd.f32 %v2845, %v2815
      %v2847 = vrot.slane %v2846, 4
      %v2848 = vadd.f32 %v2846, %v2847
      %v2849 = vrot.slane %v2848, 2
      %v2850 = vadd.f32 %v2848, %v2849
      %v2851 = vrot.slane %v2850, 1
      %v2852 = vadd.f32 %v2850, %v2851
      %v2853 = vmul.f32 %v2852, 0.00390625
      %v2854 = vld [vmem:[%s6] sm:$0x3]
      %v2856 = vlaneseq
      %v2857 = vshrl.u32 %v2856, 7
      %v2858 = vsub.s32 0, %v2857
      %v2859 = vrot.slane %v2854, %v2858
      %v2860 = vlaneseq
      %v2861 = vshrl.u32 %v2860, 7
      %v2862 = vsub.s32 1, %v2861
      %v2863 = vrot.slane %v2854, %v2862
      %v2866 = vmul.f32 %v2852, %v2859
      %v2867 = vmul.f32 %v2853, %v2863
      %vm2868 = vcmask 1040384
      %v2869 = vsel %vm2868, %v2866, 0.0
      %v2870 = vsel %vm2868, %v2867, 0.0
      %v2871 = vadd.f32 %v2869, %v2870
      %2872 = vadd.xlane.f32.xlu0 %v2871
      %v2873 = vpop.xlane.xlu0 %2872
      %v2874 = vtanh.pop %v2873
      %vm2875 = vcmask 0
      %2876 = vst.msk [vmem:[%s314] sm:$0x1] %vm2875, %v2874
      %v2877 = vld [vmem:[%s4] sm:$0xff]
      %v2878 = vld [vmem:[%s4 + $0x8] sm:$0xff]
      %v2879 = vld [vmem:[%s4 + $0x10] sm:$0xff]
      %v2880 = vld [vmem:[%s4 + $0x18] sm:$0xff]
      %v2881 = vld [vmem:[%s4 + $0x20] sm:$0xff]
      %v2882 = vld [vmem:[%s4 + $0x28] sm:$0xff]
      %v2883 = vld [vmem:[%s4 + $0x30] sm:$0xff]
      %v2884 = vld [vmem:[%s4 + $0x38] sm:$0xff]
      %v2885 = vld [vmem:[%s4 + $0x40] sm:$0xff]
      %v2886 = vld [vmem:[%s4 + $0x48] sm:$0xff]
      %v2887 = vld [vmem:[%s4 + $0x50] sm:$0xff]
      %v2888 = vld [vmem:[%s4 + $0x58] sm:$0xff]
      %v2889 = vld [vmem:[%s4 + $0x60] sm:$0xff]
      %v2890 = vld [vmem:[%s4 + $0x68] sm:$0xff]
      %v2891 = vld [vmem:[%s4 + $0x70] sm:$0xff]
      %v2892 = vld [vmem:[%s4 + $0x78] sm:$0xff]
      %v2893 = vld [vmem:[%s5] sm:$0x1]
      %v2895 = vlaneseq
      %v2896 = vshrl.u32 %v2895, 7
      %v2897 = vsub.s32 0, %v2896
      %v2898 = vrot.slane %v2893, %v2897
      %2900 = vmatprep.subr.mxu0 0.0
      %2901 = vmatpush1.msra.mxu0 %v2892
      %2902 = vmatprep.subr.mxu0 0.0
      %2903 = vmatpush1.msra.mxu0 %v2891
      %2904 = vmatprep.subr.mxu0 0.0
      %2905 = vmatpush1.msra.mxu0 %v2890
      %2906 = vmatprep.subr.mxu0 0.0
      %2907 = vmatpush1.msra.mxu0 %v2889
      %2908 = vmatprep.subr.mxu0 0.0
      %2909 = vmatpush1.msra.mxu0 %v2888
      %2910 = vmatprep.subr.mxu0 0.0
      %2911 = vmatpush1.msra.mxu0 %v2887
      %2912 = vmatprep.subr.mxu0 0.0
      %2913 = vmatpush1.msra.mxu0 %v2886
      %2914 = vmatprep.subr.mxu0 0.0
      %2915 = vmatpush1.msra.mxu0 %v2885
      %2916 = vmatprep.subr.mxu0 0.0
      %2917 = vmatpush1.msra.mxu0 %v2884
      %2918 = vmatprep.subr.mxu0 0.0
      %2919 = vmatpush1.msra.mxu0 %v2883
      %2920 = vmatprep.subr.mxu0 0.0
      %2921 = vmatpush1.msra.mxu0 %v2882
      %2922 = vmatprep.subr.mxu0 0.0
      %2923 = vmatpush1.msra.mxu0 %v2881
      %2924 = vmatprep.subr.mxu0 0.0
      %2925 = vmatpush1.msra.mxu0 %v2880
      %2926 = vmatprep.subr.mxu0 0.0
      %2927 = vmatpush1.msra.mxu0 %v2879
      %2928 = vmatprep.subr.mxu0 0.0
      %2929 = vmatpush1.msra.mxu0 %v2878
      %2930 = vmatprep.subr.mxu0 0.0
      %2931 = vmatpush1.msra.mxu0 %v2877
      %2932 = vmatprep.subr.mxu0 0.0
      %2933 = vmatpush2.msra.mxu0 0.0
      %2934 = vmatprep.subr.mxu0 0.0
      %2935 = vmatpush2.msra.mxu0 0.0
      %2936 = vmatprep.subr.mxu0 0.0
      %2937 = vmatpush2.msra.mxu0 0.0
      %2938 = vmatprep.subr.mxu0 0.0
      %2939 = vmatpush2.msra.mxu0 0.0
      %2940 = vmatprep.subr.mxu0 0.0
      %2941 = vmatpush2.msra.mxu0 0.0
      %2942 = vmatprep.subr.mxu0 0.0
      %2943 = vmatpush2.msra.mxu0 0.0
      %2944 = vmatprep.subr.mxu0 0.0
      %2945 = vmatpush2.msra.mxu0 0.0
      %2946 = vmatprep.subr.mxu0 0.0
      %2947 = vmatpush2.msra.mxu0 0.0
      %2948 = vmatprep.subr.mxu0 0.0
      %2949 = vmatpush2.msra.mxu0 0.0
      %2950 = vmatprep.subr.mxu0 0.0
      %2951 = vmatpush2.msra.mxu0 0.0
      %2952 = vmatprep.subr.mxu0 0.0
      %2953 = vmatpush2.msra.mxu0 0.0
      %2954 = vmatprep.subr.mxu0 0.0
      %2955 = vmatpush2.msra.mxu0 0.0
      %2956 = vmatprep.subr.mxu0 0.0
      %2957 = vmatpush2.msra.mxu0 0.0
      %2958 = vmatprep.subr.mxu0 0.0
      %2959 = vmatpush2.msra.mxu0 0.0
      %2960 = vmatprep.subr.mxu0 0.0
      %2961 = vmatpush2.msra.mxu0 0.0
      %2962 = vmatprep.subr.mxu0 0.0
      %2963 = vmatpush2.msra.mxu0 0.0
      %2964 = vmatprep.mubr.f32.mxu0 0.0
      %2965 = vmatmul.mubr.f32.gmra.mxu0 %v2784
      %v2966 = vpop.f32.mrf.mxu0
      %v2967 = vadd.f32 %v2898, %v2966
      %v2968 = vpop.f32.mrf.mxu0
      %2969 = vmatprep.mubr.f32.mxu0 0.0
      %2970 = vmatmul.mubr.f32.gmra.mxu0 %v2785
      %v2971 = vpop.f32.mrf.mxu0
      %v2972 = vadd.f32 %v2898, %v2971
      %v2973 = vpop.f32.mrf.mxu0
      %2974 = vmatprep.mubr.f32.mxu0 0.0
      %2975 = vmatmul.mubr.f32.gmra.mxu0 %v2786
      %v2976 = vpop.f32.mrf.mxu0
      %v2977 = vadd.f32 %v2898, %v2976
      %v2978 = vpop.f32.mrf.mxu0
      %2979 = vmatprep.mubr.f32.mxu0 0.0
      %2980 = vmatmul.mubr.f32.gmra.mxu0 %v2787
      %v2981 = vpop.f32.mrf.mxu0
      %v2982 = vadd.f32 %v2898, %v2981
      %v2983 = vpop.f32.mrf.mxu0
      %2984 = vmatprep.mubr.f32.mxu0 0.0
      %2985 = vmatmul.mubr.f32.gmra.mxu0 %v2788
      %v2986 = vpop.f32.mrf.mxu0
      %v2987 = vadd.f32 %v2898, %v2986
      %v2988 = vpop.f32.mrf.mxu0
      %2989 = vmatprep.mubr.f32.mxu0 0.0
      %2990 = vmatmul.mubr.f32.gmra.mxu0 %v2789
      %v2991 = vpop.f32.mrf.mxu0
      %v2992 = vadd.f32 %v2898, %v2991
      %v2993 = vpop.f32.mrf.mxu0
      %2994 = vmatprep.mubr.f32.mxu0 0.0
      %2995 = vmatmul.mubr.f32.gmra.mxu0 %v2790
      %v2996 = vpop.f32.mrf.mxu0
      %v2997 = vadd.f32 %v2898, %v2996
      %v2998 = vpop.f32.mrf.mxu0
      %2999 = vmatprep.mubr.f32.mxu0 0.0
      %3000 = vmatmul.mubr.f32.gmra.mxu0 %v2791
      %v3001 = vpop.f32.mrf.mxu0
      %v3002 = vadd.f32 %v2898, %v3001
      %v3003 = vpop.f32.mrf.mxu0
      %3004 = vmatprep.mubr.f32.mxu0 0.0
      %3005 = vmatmul.mubr.f32.gmra.mxu0 %v2792
      %v3006 = vpop.f32.mrf.mxu0
      %v3007 = vadd.f32 %v2898, %v3006
      %v3008 = vpop.f32.mrf.mxu0
      %3009 = vmatprep.mubr.f32.mxu0 0.0
      %3010 = vmatmul.mubr.f32.gmra.mxu0 %v2793
      %v3011 = vpop.f32.mrf.mxu0
      %v3012 = vadd.f32 %v2898, %v3011
      %v3013 = vpop.f32.mrf.mxu0
      %3014 = vmatprep.mubr.f32.mxu0 0.0
      %3015 = vmatmul.mubr.f32.gmra.mxu0 %v2794
      %v3016 = vpop.f32.mrf.mxu0
      %v3017 = vadd.f32 %v2898, %v3016
      %v3018 = vpop.f32.mrf.mxu0
      %3019 = vmatprep.mubr.f32.mxu0 0.0
      %3020 = vmatmul.mubr.f32.gmra.mxu0 %v2795
      %v3021 = vpop.f32.mrf.mxu0
      %v3022 = vadd.f32 %v2898, %v3021
      %v3023 = vpop.f32.mrf.mxu0
      %3024 = vmatprep.mubr.f32.mxu0 0.0
      %3025 = vmatmul.mubr.f32.gmra.mxu0 %v2796
      %v3026 = vpop.f32.mrf.mxu0
      %v3027 = vadd.f32 %v2898, %v3026
      %v3028 = vpop.f32.mrf.mxu0
      %3029 = vmatprep.mubr.f32.mxu0 0.0
      %3030 = vmatmul.mubr.f32.gmra.mxu0 %v2797
      %v3031 = vpop.f32.mrf.mxu0
      %v3032 = vadd.f32 %v2898, %v3031
      %v3033 = vpop.f32.mrf.mxu0
      %3034 = vmatprep.mubr.f32.mxu0 0.0
      %3035 = vmatmul.mubr.f32.gmra.mxu0 %v2798
      %v3036 = vpop.f32.mrf.mxu0
      %v3037 = vadd.f32 %v2898, %v3036
      %v3038 = vpop.f32.mrf.mxu0
      %3039 = vmatprep.mubr.f32.mxu0 0.0
      %3040 = vmatmul.mubr.f32.gmra.mxu0 %v2799
      %v3041 = vpop.f32.mrf.mxu0
      %v3042 = vadd.f32 %v2898, %v3041
      %v3043 = vpop.f32.mrf.mxu0
      %3044 = vmatprep.mubr.f32.mxu0 0.0
      %3045 = vmatmul.mubr.f32.gmra.mxu0 %v2800
      %v3046 = vpop.f32.mrf.mxu0
      %v3047 = vadd.f32 %v2898, %v3046
      %v3048 = vpop.f32.mrf.mxu0
      %3049 = vmatprep.mubr.f32.mxu0 0.0
      %3050 = vmatmul.mubr.f32.gmra.mxu0 %v2801
      %v3051 = vpop.f32.mrf.mxu0
      %v3052 = vadd.f32 %v2898, %v3051
      %v3053 = vpop.f32.mrf.mxu0
      %3054 = vmatprep.mubr.f32.mxu0 0.0
      %3055 = vmatmul.mubr.f32.gmra.mxu0 %v2802
      %v3056 = vpop.f32.mrf.mxu0
      %v3057 = vadd.f32 %v2898, %v3056
      %v3058 = vpop.f32.mrf.mxu0
      %3059 = vmatprep.mubr.f32.mxu0 0.0
      %3060 = vmatmul.mubr.f32.gmra.mxu0 %v2803
      %v3061 = vpop.f32.mrf.mxu0
      %v3062 = vadd.f32 %v2898, %v3061
      %v3063 = vpop.f32.mrf.mxu0
      %3064 = vmatprep.mubr.f32.mxu0 0.0
      %3065 = vmatmul.mubr.f32.gmra.mxu0 %v2804
      %v3066 = vpop.f32.mrf.mxu0
      %v3067 = vadd.f32 %v2898, %v3066
      %v3068 = vpop.f32.mrf.mxu0
      %3069 = vmatprep.mubr.f32.mxu0 0.0
      %3070 = vmatmul.mubr.f32.gmra.mxu0 %v2805
      %v3071 = vpop.f32.mrf.mxu0
      %v3072 = vadd.f32 %v2898, %v3071
      %v3073 = vpop.f32.mrf.mxu0
      %3074 = vmatprep.mubr.f32.mxu0 0.0
      %3075 = vmatmul.mubr.f32.gmra.mxu0 %v2806
      %v3076 = vpop.f32.mrf.mxu0
      %v3077 = vadd.f32 %v2898, %v3076
      %v3078 = vpop.f32.mrf.mxu0
      %3079 = vmatprep.mubr.f32.mxu0 0.0
      %3080 = vmatmul.mubr.f32.gmra.mxu0 %v2807
      %v3081 = vpop.f32.mrf.mxu0
      %v3082 = vadd.f32 %v2898, %v3081
      %v3083 = vpop.f32.mrf.mxu0
      %3084 = vmatprep.mubr.f32.mxu0 0.0
      %3085 = vmatmul.mubr.f32.gmra.mxu0 %v2808
      %v3086 = vpop.f32.mrf.mxu0
      %v3087 = vadd.f32 %v2898, %v3086
      %v3088 = vpop.f32.mrf.mxu0
      %3089 = vmatprep.mubr.f32.mxu0 0.0
      %3090 = vmatmul.mubr.f32.gmra.mxu0 %v2809
      %v3091 = vpop.f32.mrf.mxu0
      %v3092 = vadd.f32 %v2898, %v3091
      %v3093 = vpop.f32.mrf.mxu0
      %3094 = vmatprep.mubr.f32.mxu0 0.0
      %3095 = vmatmul.mubr.f32.gmra.mxu0 %v2810
      %v3096 = vpop.f32.mrf.mxu0
      %v3097 = vadd.f32 %v2898, %v3096
      %v3098 = vpop.f32.mrf.mxu0
      %3099 = vmatprep.mubr.f32.mxu0 0.0
      %3100 = vmatmul.mubr.f32.gmra.mxu0 %v2811
      %v3101 = vpop.f32.mrf.mxu0
      %v3102 = vadd.f32 %v2898, %v3101
      %v3103 = vpop.f32.mrf.mxu0
      %3104 = vmatprep.mubr.f32.mxu0 0.0
      %3105 = vmatmul.mubr.f32.gmra.mxu0 %v2812
      %v3106 = vpop.f32.mrf.mxu0
      %v3107 = vadd.f32 %v2898, %v3106
      %v3108 = vpop.f32.mrf.mxu0
      %3109 = vmatprep.mubr.f32.mxu0 0.0
      %3110 = vmatmul.mubr.f32.gmra.mxu0 %v2813
      %v3111 = vpop.f32.mrf.mxu0
      %v3112 = vadd.f32 %v2898, %v3111
      %v3113 = vpop.f32.mrf.mxu0
      %3114 = vmatprep.mubr.f32.mxu0 0.0
      %3115 = vmatmul.mubr.f32.gmra.mxu0 %v2814
      %v3116 = vpop.f32.mrf.mxu0
      %v3117 = vadd.f32 %v2898, %v3116
      %v3118 = vpop.f32.mrf.mxu0
      %3119 = vmatprep.mubr.f32.mxu0 0.0
      %3120 = vmatmul.mubr.f32.gmra.mxu0 %v2815
      %v3121 = vpop.f32.mrf.mxu0
      %v3122 = vadd.f32 %v2898, %v3121
      %v3123 = vpop.f32.mrf.mxu0
      %3124 = vdwg.mxu0
      %vm3125 = vcmask 64512
      %3126 = vst.msk [vmem:[%s311] sm:$0xff] %vm3125, %v2967
      %3127 = vst.msk [vmem:[%s311 + $0x8] sm:$0xff] %vm3125, %v2972
      %3128 = vst.msk [vmem:[%s311 + $0x10] sm:$0xff] %vm3125, %v2977
      %3129 = vst.msk [vmem:[%s311 + $0x18] sm:$0xff] %vm3125, %v2982
      %3130 = vst.msk [vmem:[%s311 + $0x20] sm:$0xff] %vm3125, %v2987
      %3131 = vst.msk [vmem:[%s311 + $0x28] sm:$0xff] %vm3125, %v2992
      %3132 = vst.msk [vmem:[%s311 + $0x30] sm:$0xff] %vm3125, %v2997
      %3133 = vst.msk [vmem:[%s311 + $0x38] sm:$0xff] %vm3125, %v3002
      %3134 = vst.msk [vmem:[%s311 + $0x40] sm:$0xff] %vm3125, %v3007
      %3135 = vst.msk [vmem:[%s311 + $0x48] sm:$0xff] %vm3125, %v3012
      %3136 = vst.msk [vmem:[%s311 + $0x50] sm:$0xff] %vm3125, %v3017
      %3137 = vst.msk [vmem:[%s311 + $0x58] sm:$0xff] %vm3125, %v3022
      %3138 = vst.msk [vmem:[%s311 + $0x60] sm:$0xff] %vm3125, %v3027
      %3139 = vst.msk [vmem:[%s311 + $0x68] sm:$0xff] %vm3125, %v3032
      %3140 = vst.msk [vmem:[%s311 + $0x70] sm:$0xff] %vm3125, %v3037
      %3141 = vst.msk [vmem:[%s311 + $0x78] sm:$0xff] %vm3125, %v3042
      %3142 = vst.msk [vmem:[%s311 + $0x80] sm:$0xff] %vm3125, %v3047
      %3143 = vst.msk [vmem:[%s311 + $0x88] sm:$0xff] %vm3125, %v3052
      %3144 = vst.msk [vmem:[%s311 + $0x90] sm:$0xff] %vm3125, %v3057
      %3145 = vst.msk [vmem:[%s311 + $0x98] sm:$0xff] %vm3125, %v3062
      %3146 = vst.msk [vmem:[%s311 + $0xa0] sm:$0xff] %vm3125, %v3067
      %3147 = vst.msk [vmem:[%s311 + $0xa8] sm:$0xff] %vm3125, %v3072
      %3148 = vst.msk [vmem:[%s311 + $0xb0] sm:$0xff] %vm3125, %v3077
      %3149 = vst.msk [vmem:[%s311 + $0xb8] sm:$0xff] %vm3125, %v3082
      %3150 = vst.msk [vmem:[%s311 + $0xc0] sm:$0xff] %vm3125, %v3087
      %3151 = vst.msk [vmem:[%s311 + $0xc8] sm:$0xff] %vm3125, %v3092
      %3152 = vst.msk [vmem:[%s311 + $0xd0] sm:$0xff] %vm3125, %v3097
      %3153 = vst.msk [vmem:[%s311 + $0xd8] sm:$0xff] %vm3125, %v3102
      %3154 = vst.msk [vmem:[%s311 + $0xe0] sm:$0xff] %vm3125, %v3107
      %3155 = vst.msk [vmem:[%s311 + $0xe8] sm:$0xff] %vm3125, %v3112
      %3156 = vst.msk [vmem:[%s311 + $0xf0] sm:$0xff] %vm3125, %v3117
      %3157 = vst.msk [vmem:[%s311 + $0xf8] sm:$0xff] %vm3125, %v3122
      %p3158 = scmp.lt.s32.totalorder %s20, 1
      %s3159 = scalar_select %p3158, %s20, 1
      %s3160 = smul.addr %s3159, 32
      %s3161 = smul.addr %s3160, 8
      %s3162 = scalar_lea.vmem %s7, %s3161
      %p3163 = scmp.lt.s32.totalorder %s20, 1
      %s3164 = scalar_select %p3163, %s20, 1
      %s3165 = scalar_lea.vmem %s8, %s3164
      // Predicated region
      $region56: #{_forward_jit.1} parent=47 // pred_check
        %p3166 = pneg %p190
      $region57: #{_forward_jit.1} parent=47 // pred_check_branch
        %3168 = sbr.rel (%p3166) target = $region59
      $region58: #{_forward_jit.1} parent=47 // pred_region
        _
      $region59: #{_forward_jit.1} parent=47 // pred_fallthru
        _
      // Predicated region
      $region60: #{_forward_jit.1} parent=47 // pred_check
        %p3169 = pneg %p216
      $region61: #{_forward_jit.1} parent=47 // pred_check_branch
        %3171 = sbr.rel (%p3169) target = $region63
      $region62: #{_forward_jit.1} parent=47 // pred_region
        _
      $region63: #{_forward_jit.1} parent=47 // pred_fallthru
        _
    $region48: #{_forward_jit.1} parent=5 // pred_fallthru
      _
    %p3172 = scmp.le.s32.totalorder 2, %s15
    // Predicated region
    $region64: #{_forward_jit.1} parent=5 // pred_check
      %p3173 = pneg %p3172
    $region65: #{_forward_jit.1} parent=5 // pred_check_branch
      %3175 = sbr.rel (%p3173) target = $region67
    $region66: #{_forward_jit.1} parent=5 // pred_region
      %s3176 = ssub.s32 %s15, 2
      // Predicated region
      $region68: #{_forward_jit.1} parent=66 // pred_check
        %p3177 = pneg %p196
      $region69: #{_forward_jit.1} parent=66 // pred_check_branch
        %3179 = sbr.rel (%p3177) target = $region71
      $region70: #{_forward_jit.1} parent=66 // pred_region
        %p3180 = scmp.lt.s32.totalorder %s21, 1
        %s3181 = scalar_select %p3180, %s21, 1
        %s3182 = smul.addr %s3181, 32
        %s3183 = smul.addr %s3182, 8
        %s3184 = scalar_lea.vmem %s7, %s3183
      $region71: #{_forward_jit.1} parent=66 // pred_fallthru
        _
      // Predicated region
      $region72: #{_forward_jit.1} parent=66 // pred_check
        %p3185 = pneg %p222
      $region73: #{_forward_jit.1} parent=66 // pred_check_branch
        %3187 = sbr.rel (%p3185) target = $region75
      $region74: #{_forward_jit.1} parent=66 // pred_region
        %p3188 = scmp.lt.s32.totalorder %s21, 1
        %s3189 = scalar_select %p3188, %s21, 1
        %s3190 = scalar_lea.vmem %s8, %s3189
      $region75: #{_forward_jit.1} parent=66 // pred_fallthru
        _
    $region67: #{_forward_jit.1} parent=5 // pred_fallthru
      _
  $region6: #{_forward_jit.1} parent=0 // loop_footer
    %s19 = sadd.s32 1, %s15
  $region7: #{_forward_jit.1} parent=0 // loop_footer_branch
    %14 = sbr.rel target = $region3
  $region8: #{_forward_jit.1} parent=0 // loop_exit
    _

</llo_original>
